<compile_context>
chip_gen: v5e
topology: v5e:2x2
jax: 0.10.0
libtpu: 0.0.40
codegen_flags: <defaults>
</compile_context>

<pallas_src>
import jax
import jax.numpy as jnp
from jax.experimental import pallas as pl
from jax.experimental.pallas import tpu as pltpu

EPS = 1e-05


def _conv_bn_relu_kernel(x_ref, w_ref, gb_ref, o_ref):
    # x_ref:  (Cin, M)        full input, resident across all grid steps
    # w_ref:  (Cb,  Cin)      Cout-block of the 1x1 conv weight
    # gb_ref: (Cb,  2)        packed [gamma, beta] for this Cout-block
    # o_ref:  (Cb,  M)
    x = x_ref[...]
    w = w_ref[...]
    gb = gb_ref[...]
    gamma = gb[:, 0:1]                                              # (Cb, 1)
    beta = gb[:, 1:2]                                               # (Cb, 1)

    # 1x1 convolution == matmul on the MXU, result already in (Cout, M) order.
    y = jnp.dot(w, x, preferred_element_type=jnp.float32)          # (Cb, M)

    # BatchNorm (training mode) batch stats over M, biased variance, centered
    # two-pass formulation (numerically robust, var >= 0 by construction).
    inv_m = 1.0 / y.shape[1]
    mean = jnp.sum(y, axis=1, keepdims=True) * inv_m                # (Cb, 1)
    centered = y - mean
    var = jnp.sum(centered * centered, axis=1, keepdims=True) * inv_m
    inv_std = jax.lax.rsqrt(var + EPS)

    # Fold BN affine into one scale, then ReLU — single elementwise epilogue.
    scale = gamma * inv_std                                         # (Cb, 1)
    o_ref[...] = jnp.maximum(centered * scale + beta, 0.0).astype(o_ref.dtype)


def _pick_cout_blocks(cout):
    """Chip-aware Cout split: 2 (v7x megacore / default), 3 (v5e DMA pipelining), 1 (v6e)."""
    try:
        kind = jax.devices()[0].device_kind.lower()
    except Exception:
        kind = ""
    if "v5 lite" in kind or "v5e" in kind or "v5lite" in kind:
        n = 3            # 208-row blocks: overlap w-in / out-writeback DMA with compute
    elif "v6" in kind or "trillium" in kind:
        n = 1            # single VMEM-resident block; step overhead > DMA savings
    else:
        n = 2            # v7x (2 TCs/chip) and unknown chips: shard Cout across cores
    # Blocks must be sublane-aligned (multiple of 8) and divide Cout exactly.
    if cout % n != 0 or (cout // n) % 8 != 0:
        n = 1
    return n


def conv2d_bn_relu(x_nchw, weight, gamma, beta):
    """x_nchw: (N, Cin, H, W); weight: (Cout, Cin, 1, 1); gamma/beta: (Cout,)."""
    n, cin, h, w = x_nchw.shape
    cout = weight.shape[0]
    m = n * h * w

    # NCHW -> (Cin, M). For N=1 this is a pure reshape (no data movement).
    if n == 1:
        x_mat = x_nchw.reshape(cin, m)
    else:
        # TODO(synk): for N>1, grid over N inside the kernel (with cross-N stat
        # accumulation) instead of paying this HBM round-trip transpose.
        x_mat = jnp.transpose(x_nchw, (1, 0, 2, 3)).reshape(cin, m)

    # (Cout, Cin, 1, 1) -> (Cout, Cin): pure reshape, no transpose.
    w_mat = weight.reshape(cout, cin)
    # Pack gamma/beta into a single (Cout, 2) input: one small contiguous DMA
    # instead of two (Cout, 1) column DMAs each padding to a full 624x128 tile.
    gb = jnp.stack([gamma, beta], axis=1)                           # (Cout, 2)

    nblk = _pick_cout_blocks(cout)
    cb = cout // nblk

    out_mat = pl.pallas_call(
        _conv_bn_relu_kernel,
        out_shape=jax.ShapeDtypeStruct((cout, m), jnp.float32),
        grid=(nblk,),
        in_specs=[
            pl.BlockSpec((cin, m), lambda i: (0, 0)),   # x: fetched once, stays resident
            pl.BlockSpec((cb, cin), lambda i: (i, 0)),  # per-block weight slab
            pl.BlockSpec((cb, 2), lambda i: (i, 0)),    # per-block packed gamma/beta
        ],
        out_specs=pl.BlockSpec((cb, m), lambda i: (i, 0)),
        compiler_params=pltpu.CompilerParams(dimension_semantics=("parallel",)),
    )(x_mat, w_mat, gb)

    # (Cout, M) -> NCHW. For N=1 this is a pure reshape (no data movement).
    if n == 1:
        return out_mat.reshape(n, cout, h, w)
    return jnp.transpose(out_mat.reshape(cout, n, h, w), (1, 0, 2, 3))


def _reference(x_nchw, weight, gamma, beta):
    """Pure-JAX reference of Conv1x1 + training-mode BN + ReLU (sanity check)."""
    n, cin, h, w = x_nchw.shape
    cout = weight.shape[0]
    x_mat = jnp.transpose(x_nchw, (0, 2, 3, 1)).reshape(n * h * w, cin)
    w_mat = weight.reshape(cout, cin).T
    y = x_mat @ w_mat
    mean = jnp.mean(y, axis=0, keepdims=True)
    var = jnp.mean((y - mean) ** 2, axis=0, keepdims=True)
    out = (y - mean) / jnp.sqrt(var + EPS) * gamma.reshape(1, -1) + beta.reshape(1, -1)
    out = jnp.maximum(out, 0.0)
    return jnp.transpose(out.reshape(n, h, w, cout), (0, 3, 1, 2))


if __name__ == "__main__":
    key = jax.random.PRNGKey(0)
    k_x, k_w, k_g, k_b = jax.random.split(key, 4)

    N, CIN, H, W = 1, 104, 14, 14
    COUT = 624

    x = jax.random.normal(k_x, (N, CIN, H, W), dtype=jnp.float32)
    weight = jax.random.normal(k_w, (COUT, CIN, 1, 1), dtype=jnp.float32) * 0.05
    gamma = 1.0 + 0.1 * jax.random.normal(k_g, (COUT,), dtype=jnp.float32)
    beta = 0.1 * jax.random.normal(k_b, (COUT,), dtype=jnp.float32)

    out = conv2d_bn_relu(x, weight, gamma, beta)
    out = jax.block_until_ready(out)

    ref = jax.block_until_ready(_reference(x, weight, gamma, beta))
    assert out.shape == (N, COUT, H, W), out.shape
    assert jnp.allclose(out, ref, atol=1e-4, rtol=1e-4), "mismatch vs reference"

    print("KERNEL_OK")
</pallas_src>

<mosaic_0001>
module attributes {stable_mosaic.version = 11 : i64} {
  func.func @_conv_bn_relu_kernel(%arg0: i32, %arg1: memref<104x196xf32, #tpu.memory_space<vmem>>, %arg2: memref<312x104xf32, #tpu.memory_space<vmem>>, %arg3: memref<312x2xf32, #tpu.memory_space<vmem>>, %arg4: memref<312x196xf32, #tpu.memory_space<vmem>>) attributes {dimension_semantics = [#tpu.dimension_semantics<parallel>], iteration_bounds = array<i64: 2>, scalar_prefetch = 0 : i64, scratch_operands = 0 : i64, tpu.core_type = #tpu.core_type<tc>, window_params = [{pipeline_mode = #tpu.pipeline_mode<synchronous>, transform_indices = @transform_0, window_bounds = array<i64: 104, 196>}, {transform_indices = @transform_1, window_bounds = array<i64: 312, 104>}, {transform_indices = @transform_2, window_bounds = array<i64: 312, 2>}, {transform_indices = @transform_3, window_bounds = array<i64: 312, 196>}]} {
    %c0 = arith.constant 0 : index
    %c0_0 = arith.constant 0 : index
    %0 = vector.load %arg1[%c0, %c0_0] : memref<104x196xf32, #tpu.memory_space<vmem>>, vector<104x196xf32>
    %c0_1 = arith.constant 0 : index
    %c0_2 = arith.constant 0 : index
    %1 = vector.load %arg2[%c0_1, %c0_2] : memref<312x104xf32, #tpu.memory_space<vmem>>, vector<312x104xf32>
    %c0_3 = arith.constant 0 : index
    %c0_4 = arith.constant 0 : index
    %2 = vector.load %arg3[%c0_3, %c0_4] : memref<312x2xf32, #tpu.memory_space<vmem>>, vector<312x2xf32>
    %3 = vector.extract_strided_slice %2 {offsets = [0, 0], sizes = [312, 1], strides = [1, 1]} : vector<312x2xf32> to vector<312x1xf32>
    %4 = vector.extract_strided_slice %2 {offsets = [0, 1], sizes = [312, 1], strides = [1, 1]} : vector<312x2xf32> to vector<312x1xf32>
    %cst = arith.constant dense<0.000000e+00> : vector<312x196xf32>
    %5 = tpu.matmul %1, %0, %cst {dimension_numbers = #tpu.dot_dimension_numbers<[1], [0], [0], [1], [0, 0, 1, 1], [], []>} : vector<312x104xf32>, vector<104x196xf32>, vector<312x196xf32> -> vector<312x196xf32>
    %cst_5 = arith.constant dense<0.000000e+00> : vector<312xf32>
    %6 = vector.multi_reduction <add>, %5, %cst_5 [1] : vector<312x196xf32> to vector<312xf32>
    %7 = vector.shape_cast %6 : vector<312xf32> to vector<312x1xf32>
    %cst_6 = arith.constant 0.00510204071 : f32
    %8 = vector.broadcast %cst_6 : f32 to vector<312x1xf32>
    %9 = arith.mulf %7, %8 : vector<312x1xf32>
    %10 = vector.broadcast %9 : vector<312x1xf32> to vector<312x196xf32>
    %11 = arith.subf %5, %10 : vector<312x196xf32>
    %12 = arith.mulf %11, %11 : vector<312x196xf32>
    %cst_7 = arith.constant dense<0.000000e+00> : vector<312xf32>
    %13 = vector.multi_reduction <add>, %12, %cst_7 [1] : vector<312x196xf32> to vector<312xf32>
    %14 = vector.shape_cast %13 : vector<312xf32> to vector<312x1xf32>
    %cst_8 = arith.constant 0.00510204071 : f32
    %15 = vector.broadcast %cst_8 : f32 to vector<312x1xf32>
    %16 = arith.mulf %14, %15 : vector<312x1xf32>
    %cst_9 = arith.constant 9.99999974E-6 : f32
    %17 = vector.broadcast %cst_9 : f32 to vector<312x1xf32>
    %18 = arith.addf %16, %17 : vector<312x1xf32>
    %19 = math.rsqrt %18 : vector<312x1xf32>
    %20 = arith.mulf %3, %19 : vector<312x1xf32>
    %21 = vector.broadcast %20 : vector<312x1xf32> to vector<312x196xf32>
    %22 = arith.mulf %11, %21 : vector<312x196xf32>
    %23 = vector.broadcast %4 : vector<312x1xf32> to vector<312x196xf32>
    %24 = arith.addf %22, %23 : vector<312x196xf32>
    %cst_10 = arith.constant 0.000000e+00 : f32
    %25 = vector.broadcast %cst_10 : f32 to vector<312x196xf32>
    %26 = arith.maximumf %24, %25 : vector<312x196xf32>
    %c0_11 = arith.constant 0 : index
    %c0_12 = arith.constant 0 : index
    %27 = vector.load %arg4[%c0_11, %c0_12] : memref<312x196xf32, #tpu.memory_space<vmem>>, vector<312x196xf32>
    tpu.vector_store %arg4[%c0_11, %c0_12], %26 {strides = array<i32>} : memref<312x196xf32, #tpu.memory_space<vmem>>, vector<312x196xf32>,
    return
  }
  func.func @transform_0(%arg0: i32) -> (i32, i32) {
    %c0_i32 = arith.constant 0 : i32
    %c0_i32_0 = arith.constant 0 : i32
    %c0_i32_1 = arith.constant 0 : i32
    return %c0_i32, %c0_i32_0 : i32, i32
  }
  func.func @transform_1(%arg0: i32) -> (i32, i32) {
    %c0_i32 = arith.constant 0 : i32
    %c0_i32_0 = arith.constant 0 : i32
    return %arg0, %c0_i32 : i32, i32
  }
  func.func @transform_2(%arg0: i32) -> (i32, i32) {
    %c0_i32 = arith.constant 0 : i32
    %c0_i32_0 = arith.constant 0 : i32
    return %arg0, %c0_i32 : i32, i32
  }
  func.func @transform_3(%arg0: i32) -> (i32, i32) {
    %c0_i32 = arith.constant 0 : i32
    %c0_i32_0 = arith.constant 0 : i32
    return %arg0, %c0_i32 : i32, i32
  }
}

</mosaic_0001>

<llo_original>
// kernel: tpu_custom_call.1
$region0: #{tpu_custom_call.1}
  #allocation0 [shape = 'u32[]', space=smem, size = 0x4, offset = 0x4, fixed_abs, tag = 'smem constant byte address 0x4 - core index']
  #allocation1 [shape = 'u32[72,128]{1,0:T(1,128)}', space=vmem, size = 0x9000, scoped, tag = 'internal scratch']
  %s0 = inlined_call_operand.vmem [shape: f32[104,196], index: 0, kind: input, shape index: {}]
  %s1 = inlined_call_operand.vmem [shape: f32[624,104], index: 1, kind: input, shape index: {}]
  %s2 = inlined_call_operand.vmem [shape: f32[624,2], index: 2, kind: input, shape index: {}]
  %s3 = inlined_call_operand.vmem [shape: f32[624,196], index: 3, kind: output, shape index: {}]
  %s4 = sld [smem:[#allocation0]]
  $region45: #{tpu_custom_call.1} parent=0
    _
  %s6 = ssub.s32 1, %s4
  %s7 = scalar_select 0, %s6, %s4
  loop: start=0, step=1, limit=4
  $region2: #{tpu_custom_call.1} parent=0 // loop_pre_header
    _
  $region3: #{tpu_custom_call.1} parent=0 // loop_header
    %s9 = sphi 0, %s13
    %p10 = scmp.ge.s32.totalorder %s9, 4
    %s17 = sphi 0, %s17
    %s19 = sphi 0, %s17
    %s20 = sphi 0, %s19
    %s34 = sphi 0, %s20
    %s40 = sphi 0, %s42
    %s43 = sphi 0, %s40
    %s44 = sphi 0, %s43
    %s60 = sphi 0, %s44
    %s66 = sphi 0, %s68
    %s69 = sphi 0, %s66
    %s70 = sphi 0, %s69
    %s86 = sphi 0, %s70
    %s92 = sphi 0, %s94
    %s95 = sphi 0, %s92
    %s96 = sphi 0, %s95
    %s112 = sphi 0, %s96
  $region4: #{tpu_custom_call.1} parent=0 // loop_header_branch
    %12 = sbr.rel (%p10) target = $region8
  $region5: #{tpu_custom_call.1} parent=0 // loop_body
    %s14 = ssub.s32 %s9, 1
    %s15 = ssub.s32 %s9, 2
    %s16 = sadd.s32 %s9, 1
    %s18 = sadd.s32 %s17, 1
    %p21 = scmp.eq.s32.totalorder %s9, 1
    %p22 = scmp.ne.s32.totalorder %s17, %s19
    %p23 = scmp.eq.s32.totalorder %s9, 0
    %p24 = por %p22, %p23
    %p25 = scmp.ne.s32.totalorder %s17, %s19
    %p26 = scmp.eq.s32.totalorder %s14, 1
    %p27 = por %p25, %p26
    %p28 = scmp.ne.s32.totalorder %s19, %s20
    %p29 = scmp.eq.s32.totalorder %s14, 0
    %p30 = por %p28, %p29
    %p31 = scmp.ne.s32.totalorder %s19, %s20
    %p32 = scmp.eq.s32.totalorder %s15, 1
    %p33 = por %p31, %p32
    %p35 = scmp.ne.s32.totalorder %s20, %s34
    %p36 = scmp.eq.s32.totalorder %s15, 0
    %p37 = por %p35, %p36
    %s38 = ssub.s32 %s9, %s16
    %p39 = scmp.eq.s32.totalorder %s38, 0
    %s41 = sadd.s32 %s40, 1
    %s42 = scalar_select %p39, %s40, %s41
    %p45 = pneg %p39
    %p46 = scmp.eq.s32.totalorder %s9, 1
    %p47 = por %p45, %p46
    %p48 = scmp.ne.s32.totalorder %s40, %s43
    %p49 = scmp.eq.s32.totalorder %s9, 0
    %p50 = por %p48, %p49
    %p51 = scmp.ne.s32.totalorder %s40, %s43
    %p52 = scmp.eq.s32.totalorder %s14, 1
    %p53 = por %p51, %p52
    %p54 = scmp.ne.s32.totalorder %s43, %s44
    %p55 = scmp.eq.s32.totalorder %s14, 0
    %p56 = por %p54, %p55
    %p57 = scmp.ne.s32.totalorder %s43, %s44
    %p58 = scmp.eq.s32.totalorder %s15, 1
    %p59 = por %p57, %p58
    %p61 = scmp.ne.s32.totalorder %s44, %s60
    %p62 = scmp.eq.s32.totalorder %s15, 0
    %p63 = por %p61, %p62
    %s64 = ssub.s32 %s9, %s16
    %p65 = scmp.eq.s32.totalorder %s64, 0
    %s67 = sadd.s32 %s66, 1
    %s68 = scalar_select %p65, %s66, %s67
    %p71 = pneg %p65
    %p72 = scmp.eq.s32.totalorder %s9, 1
    %p73 = por %p71, %p72
    %p74 = scmp.ne.s32.totalorder %s66, %s69
    %p75 = scmp.eq.s32.totalorder %s9, 0
    %p76 = por %p74, %p75
    %p77 = scmp.ne.s32.totalorder %s66, %s69
    %p78 = scmp.eq.s32.totalorder %s14, 1
    %p79 = por %p77, %p78
    %p80 = scmp.ne.s32.totalorder %s69, %s70
    %p81 = scmp.eq.s32.totalorder %s14, 0
    %p82 = por %p80, %p81
    %p83 = scmp.ne.s32.totalorder %s69, %s70
    %p84 = scmp.eq.s32.totalorder %s15, 1
    %p85 = por %p83, %p84
    %p87 = scmp.ne.s32.totalorder %s70, %s86
    %p88 = scmp.eq.s32.totalorder %s15, 0
    %p89 = por %p87, %p88
    %s90 = ssub.s32 %s9, %s16
    %p91 = scmp.eq.s32.totalorder %s90, 0
    %s93 = sadd.s32 %s92, 1
    %s94 = scalar_select %p91, %s92, %s93
    %p97 = pneg %p91
    %p98 = scmp.eq.s32.totalorder %s9, 1
    %p99 = por %p97, %p98
    %p100 = scmp.ne.s32.totalorder %s92, %s95
    %p101 = scmp.eq.s32.totalorder %s9, 0
    %p102 = por %p100, %p101
    %p103 = scmp.ne.s32.totalorder %s92, %s95
    %p104 = scmp.eq.s32.totalorder %s14, 1
    %p105 = por %p103, %p104
    %p106 = scmp.ne.s32.totalorder %s95, %s96
    %p107 = scmp.eq.s32.totalorder %s14, 0
    %p108 = por %p106, %p107
    %p109 = scmp.ne.s32.totalorder %s95, %s96
    %p110 = scmp.eq.s32.totalorder %s15, 1
    %p111 = por %p109, %p110
    %p113 = scmp.ne.s32.totalorder %s96, %s112
    %p114 = scmp.eq.s32.totalorder %s15, 0
    %p115 = por %p113, %p114
    %p116 = scmp.le.s32.totalorder 1, %s9
    %p117 = scmp.lt.s32.totalorder %s9, 3
    %p118 = pnand %p116, %p117
    %p119 = pneg %p118
    // Predicated region
    $region9: #{tpu_custom_call.1} parent=5 // pred_check
      _
    $region10: #{tpu_custom_call.1} parent=5 // pred_check_branch
      %121 = sbr.rel (%p118) target = $region12
    $region11: #{tpu_custom_call.1} parent=5 // pred_region
      %s122 = ssub.s32 %s9, 1
      // Predicated region
      $region13: #{tpu_custom_call.1} parent=11 // pred_check
        %p123 = pneg %p30
      $region14: #{tpu_custom_call.1} parent=11 // pred_check_branch
        %125 = sbr.rel (%p123) target = $region16
      $region15: #{tpu_custom_call.1} parent=11 // pred_region
        _
      $region16: #{tpu_custom_call.1} parent=11 // pred_fallthru
        _
    $region12: #{tpu_custom_call.1} parent=5 // pred_fallthru
      _
    %p126 = scmp.lt.s32.totalorder %s9, 2
    // Predicated region
    $region17: #{tpu_custom_call.1} parent=5 // pred_check
      %p127 = pneg %p126
    $region18: #{tpu_custom_call.1} parent=5 // pred_check_branch
      %129 = sbr.rel (%p127) target = $region20
    $region19: #{tpu_custom_call.1} parent=5 // pred_region
      // Predicated region
      $region21: #{tpu_custom_call.1} parent=19 // pred_check
        %p130 = pneg %p50
      $region22: #{tpu_custom_call.1} parent=19 // pred_check_branch
        %132 = sbr.rel (%p130) target = $region24
      $region23: #{tpu_custom_call.1} parent=19 // pred_region
        %s133 = smul.u32 39, %s9
        %p134 = scmp.lt.s32.totalorder %s133, 77
        %s135 = scalar_select %p134, %s133, 77
        %s136 = smul.addr %s135, 8
        %s137 = scalar_lea.vmem %s1, %s136
        %s138 = smul.u32 39, %s9
      $region24: #{tpu_custom_call.1} parent=19 // pred_fallthru
        _
      // Predicated region
      $region25: #{tpu_custom_call.1} parent=19 // pred_check
        %p139 = pneg %p76
      $region26: #{tpu_custom_call.1} parent=19 // pred_check_branch
        %141 = sbr.rel (%p139) target = $region28
      $region27: #{tpu_custom_call.1} parent=19 // pred_region
        %s142 = smul.u32 39, %s9
        %p143 = scmp.lt.s32.totalorder %s142, 77
        %s144 = scalar_select %p143, %s142, 77
        %s145 = smul.addr %s144, 8
        %s146 = scalar_lea.vmem %s2, %s145
        %s147 = smul.u32 39, %s9
      $region28: #{tpu_custom_call.1} parent=19 // pred_fallthru
        _
    $region20: #{tpu_custom_call.1} parent=5 // pred_fallthru
      _
    %p148 = scmp.le.s32.totalorder 1, %s9
    %p149 = scmp.lt.s32.totalorder %s9, 3
    %p150 = pnand %p148, %p149
    %p151 = pneg %p150
    // Predicated region
    $region29: #{tpu_custom_call.1} parent=5 // pred_check
      _
    $region30: #{tpu_custom_call.1} parent=5 // pred_check_branch
      %153 = sbr.rel (%p150) target = $region32
    $region31: #{tpu_custom_call.1} parent=5 // pred_region
      %s154 = ssub.s32 %s9, 1
      %p155 = pneg %p30
      %p156 = pneg %p27
      %s157 = smul.u32 39, %s14
      %p158 = scmp.lt.s32.totalorder %s157, 77
      %s159 = scalar_select %p158, %s157, 77
      %s160 = smul.addr %s159, 8
      %s161 = scalar_lea.vmem %s1, %s160
      %p162 = pneg %p56
      %p163 = pneg %p53
      %s164 = smul.u32 39, %s14
      %p165 = scmp.lt.s32.totalorder %s164, 77
      %s166 = scalar_select %p165, %s164, 77
      %s167 = smul.addr %s166, 8
      %s168 = scalar_lea.vmem %s2, %s167
      %p169 = pneg %p82
      %p170 = pneg %p79
      %p171 = pneg %p108
      %p172 = pneg %p105
      %s173 = smul.u32 39, %s14
      %p174 = scmp.lt.s32.totalorder %s173, 77
      %s175 = scalar_select %p174, %s173, 77
      %s176 = smul.addr %s175, 2
      %s177 = smul.addr %s176, 8
      %s178 = scalar_lea.vmem %s3, %s177
      %s179 = smul.u32 39, %s14
      %p180 = scmp.lt.s32.totalorder %s179, 77
      %s181 = scalar_select %p180, %s179, 77
      %s182 = smul.addr %s181, 8
      %s183 = scalar_lea.vmem %s1, %s182
      %s184 = smul.u32 39, %s14
      %s185 = smul.u32 39, %s14
      %p186 = scmp.lt.s32.totalorder %s185, 77
      %s187 = scalar_select %p186, %s185, 77
      %s188 = smul.addr %s187, 8
      %s189 = scalar_lea.vmem %s2, %s188
      %s190 = smul.u32 39, %s14
      %s191 = smul.u32 39, %s14
      %p192 = scmp.lt.s32.totalorder %s191, 77
      %s193 = scalar_select %p192, %s191, 77
      %s194 = smul.addr %s193, 2
      %s195 = smul.addr %s194, 8
      %s196 = scalar_lea.vmem %s3, %s195
      %s197 = smul.u32 39, %s14
      %v198 = vld [vmem:[%s0] sm:$0xff]
      %v199 = vld [vmem:[%s0 + $0x8] sm:$0xff]
      %v200 = vld [vmem:[%s0 + $0x10] sm:$0xff]
      %v201 = vld [vmem:[%s0 + $0x18] sm:$0xff]
      %v202 = vld [vmem:[%s0 + $0x20] sm:$0xff]
      %v203 = vld [vmem:[%s0 + $0x28] sm:$0xff]
      %v204 = vld [vmem:[%s0 + $0x30] sm:$0xff]
      %v205 = vld [vmem:[%s0 + $0x38] sm:$0xff]
      %v206 = vld [vmem:[%s0 + $0x40] sm:$0xff]
      %v207 = vld [vmem:[%s0 + $0x48] sm:$0xff]
      %v208 = vld [vmem:[%s0 + $0x50] sm:$0xff]
      %v209 = vld [vmem:[%s0 + $0x58] sm:$0xff]
      %v210 = vld [vmem:[%s0 + $0x60] sm:$0xff]
      %v211 = vld [vmem:[%s0 + $0x68] sm:$0xff]
      %v212 = vld [vmem:[%s0 + $0x70] sm:$0xff]
      %v213 = vld [vmem:[%s0 + $0x78] sm:$0xff]
      %v214 = vld [vmem:[%s0 + $0x80] sm:$0xff]
      %v215 = vld [vmem:[%s0 + $0x88] sm:$0xff]
      %v216 = vld [vmem:[%s0 + $0x90] sm:$0xff]
      %v217 = vld [vmem:[%s0 + $0x98] sm:$0xff]
      %v218 = vld [vmem:[%s0 + $0xa0] sm:$0xff]
      %v219 = vld [vmem:[%s0 + $0xa8] sm:$0xff]
      %v220 = vld [vmem:[%s0 + $0xb0] sm:$0xff]
      %v221 = vld [vmem:[%s0 + $0xb8] sm:$0xff]
      %v222 = vld [vmem:[%s0 + $0xc0] sm:$0xff]
      %v223 = vld [vmem:[%s0 + $0xc8] sm:$0xff]
      %v224 = vld [vmem:[%s183] sm:$0xff]
      %v225 = vld [vmem:[%s183 + $0x8] sm:$0xff]
      %v226 = vld [vmem:[%s183 + $0x10] sm:$0xff]
      %v227 = vld [vmem:[%s183 + $0x18] sm:$0xff]
      %v228 = vld [vmem:[%s183 + $0x20] sm:$0xff]
      %v229 = vld [vmem:[%s183 + $0x28] sm:$0xff]
      %v230 = vld [vmem:[%s183 + $0x30] sm:$0xff]
      %v231 = vld [vmem:[%s183 + $0x38] sm:$0xff]
      %v232 = vld [vmem:[%s183 + $0x40] sm:$0xff]
      %v233 = vld [vmem:[%s183 + $0x48] sm:$0xff]
      %v234 = vld [vmem:[%s183 + $0x50] sm:$0xff]
      %v235 = vld [vmem:[%s183 + $0x58] sm:$0xff]
      %v236 = vld [vmem:[%s183 + $0x60] sm:$0xff]
      %v237 = vld [vmem:[%s183 + $0x68] sm:$0xff]
      %v238 = vld [vmem:[%s183 + $0x70] sm:$0xff]
      %v239 = vld [vmem:[%s183 + $0x78] sm:$0xff]
      %v240 = vld [vmem:[%s183 + $0x80] sm:$0xff]
      %v241 = vld [vmem:[%s183 + $0x88] sm:$0xff]
      %v242 = vld [vmem:[%s183 + $0x90] sm:$0xff]
      %v243 = vld [vmem:[%s183 + $0x98] sm:$0xff]
      %v244 = vld [vmem:[%s183 + $0xa0] sm:$0xff]
      %v245 = vld [vmem:[%s183 + $0xa8] sm:$0xff]
      %v246 = vld [vmem:[%s183 + $0xb0] sm:$0xff]
      %v247 = vld [vmem:[%s183 + $0xb8] sm:$0xff]
      %v248 = vld [vmem:[%s183 + $0xc0] sm:$0xff]
      %v249 = vld [vmem:[%s183 + $0xc8] sm:$0xff]
      %v250 = vld [vmem:[%s183 + $0xd0] sm:$0xff]
      %v251 = vld [vmem:[%s183 + $0xd8] sm:$0xff]
      %v252 = vld [vmem:[%s183 + $0xe0] sm:$0xff]
      %v253 = vld [vmem:[%s183 + $0xe8] sm:$0xff]
      %v254 = vld [vmem:[%s183 + $0xf0] sm:$0xff]
      %v255 = vld [vmem:[%s183 + $0xf8] sm:$0xff]
      %v256 = vld [vmem:[%s183 + $0x100] sm:$0xff]
      %v257 = vld [vmem:[%s183 + $0x108] sm:$0xff]
      %v258 = vld [vmem:[%s183 + $0x110] sm:$0xff]
      %v259 = vld [vmem:[%s183 + $0x118] sm:$0xff]
      %v260 = vld [vmem:[%s183 + $0x120] sm:$0xff]
      %v261 = vld [vmem:[%s183 + $0x128] sm:$0xff]
      %v262 = vld [vmem:[%s183 + $0x130] sm:$0xff]
      %v263 = vld [vmem:[%s189] sm:$0xff]
      %v264 = vld [vmem:[%s189 + $0x8] sm:$0xff]
      %v265 = vld [vmem:[%s189 + $0x10] sm:$0xff]
      %v266 = vld [vmem:[%s189 + $0x18] sm:$0xff]
      %v267 = vld [vmem:[%s189 + $0x20] sm:$0xff]
      %v268 = vld [vmem:[%s189 + $0x28] sm:$0xff]
      %v269 = vld [vmem:[%s189 + $0x30] sm:$0xff]
      %v270 = vld [vmem:[%s189 + $0x38] sm:$0xff]
      %v271 = vld [vmem:[%s189 + $0x40] sm:$0xff]
      %v272 = vld [vmem:[%s189 + $0x48] sm:$0xff]
      %v273 = vld [vmem:[%s189 + $0x50] sm:$0xff]
      %v274 = vld [vmem:[%s189 + $0x58] sm:$0xff]
      %v275 = vld [vmem:[%s189 + $0x60] sm:$0xff]
      %v276 = vld [vmem:[%s189 + $0x68] sm:$0xff]
      %v277 = vld [vmem:[%s189 + $0x70] sm:$0xff]
      %v278 = vld [vmem:[%s189 + $0x78] sm:$0xff]
      %v279 = vld [vmem:[%s189 + $0x80] sm:$0xff]
      %v280 = vld [vmem:[%s189 + $0x88] sm:$0xff]
      %v281 = vld [vmem:[%s189 + $0x90] sm:$0xff]
      %v282 = vld [vmem:[%s189 + $0x98] sm:$0xff]
      %v283 = vld [vmem:[%s189 + $0xa0] sm:$0xff]
      %v284 = vld [vmem:[%s189 + $0xa8] sm:$0xff]
      %v285 = vld [vmem:[%s189 + $0xb0] sm:$0xff]
      %v286 = vld [vmem:[%s189 + $0xb8] sm:$0xff]
      %v287 = vld [vmem:[%s189 + $0xc0] sm:$0xff]
      %v288 = vld [vmem:[%s189 + $0xc8] sm:$0xff]
      %v289 = vld [vmem:[%s189 + $0xd0] sm:$0xff]
      %v290 = vld [vmem:[%s189 + $0xd8] sm:$0xff]
      %v291 = vld [vmem:[%s189 + $0xe0] sm:$0xff]
      %v292 = vld [vmem:[%s189 + $0xe8] sm:$0xff]
      %v293 = vld [vmem:[%s189 + $0xf0] sm:$0xff]
      %v294 = vld [vmem:[%s189 + $0xf8] sm:$0xff]
      %v295 = vld [vmem:[%s189 + $0x100] sm:$0xff]
      %v296 = vld [vmem:[%s189 + $0x108] sm:$0xff]
      %v297 = vld [vmem:[%s189 + $0x110] sm:$0xff]
      %v298 = vld [vmem:[%s189 + $0x118] sm:$0xff]
      %v299 = vld [vmem:[%s189 + $0x120] sm:$0xff]
      %v300 = vld [vmem:[%s189 + $0x128] sm:$0xff]
      %v301 = vld [vmem:[%s189 + $0x130] sm:$0xff]
      %vm302 = vcmask 850944
      %v304 = vsel %vm302, %v224, 0
      %v307 = vsel %vm302, %v225, 0
      %v310 = vsel %vm302, %v226, 0
      %v313 = vsel %vm302, %v227, 0
      %v316 = vsel %vm302, %v228, 0
      %v319 = vsel %vm302, %v229, 0
      %v322 = vsel %vm302, %v230, 0
      %v325 = vsel %vm302, %v231, 0
      %v328 = vsel %vm302, %v232, 0
      %v331 = vsel %vm302, %v233, 0
      %v334 = vsel %vm302, %v234, 0
      %v337 = vsel %vm302, %v235, 0
      %v340 = vsel %vm302, %v236, 0
      %v343 = vsel %vm302, %v237, 0
      %v346 = vsel %vm302, %v238, 0
      %v349 = vsel %vm302, %v239, 0
      %v352 = vsel %vm302, %v240, 0
      %v355 = vsel %vm302, %v241, 0
      %v358 = vsel %vm302, %v242, 0
      %v361 = vsel %vm302, %v243, 0
      %v364 = vsel %vm302, %v244, 0
      %v367 = vsel %vm302, %v245, 0
      %v370 = vsel %vm302, %v246, 0
      %v373 = vsel %vm302, %v247, 0
      %v376 = vsel %vm302, %v248, 0
      %v379 = vsel %vm302, %v249, 0
      %v382 = vsel %vm302, %v250, 0
      %v385 = vsel %vm302, %v251, 0
      %v388 = vsel %vm302, %v252, 0
      %v391 = vsel %vm302, %v253, 0
      %v394 = vsel %vm302, %v254, 0
      %v397 = vsel %vm302, %v255, 0
      %v400 = vsel %vm302, %v256, 0
      %v403 = vsel %vm302, %v257, 0
      %v406 = vsel %vm302, %v258, 0
      %v409 = vsel %vm302, %v259, 0
      %v412 = vsel %vm302, %v260, 0
      %v415 = vsel %vm302, %v261, 0
      %v418 = vsel %vm302, %v262, 0
      %420 = vmatpush.msra.mxu0 0.0
      %421 = vmatpush.msra.mxu0 0.0
      %422 = vmatpush.msra.mxu0 0.0
      %423 = vmatpush.msra.mxu0 %v222
      %424 = vmatpush.msra.mxu0 %v220
      %425 = vmatpush.msra.mxu0 %v218
      %426 = vmatpush.msra.mxu0 %v216
      %427 = vmatpush.msra.mxu0 %v214
      %428 = vmatpush.msra.mxu0 %v212
      %429 = vmatpush.msra.mxu0 %v210
      %430 = vmatpush.msra.mxu0 %v208
      %431 = vmatpush.msra.mxu0 %v206
      %432 = vmatpush.msra.mxu0 %v204
      %433 = vmatpush.msra.mxu0 %v202
      %434 = vmatpush.msra.mxu0 %v200
      %435 = vmatpush.msra.mxu0 %v198
      %436 = vmatmul.f32.gmra.mxu0 %v304
      %v437 = vpop.f32.mrf.mxu0
      %v438 = vadd.f32 0.0, %v437
      %439 = vmatmul.f32.gmra.mxu0 %v307
      %v440 = vpop.f32.mrf.mxu0
      %v441 = vadd.f32 0.0, %v440
      %442 = vmatmul.f32.gmra.mxu0 %v310
      %v443 = vpop.f32.mrf.mxu0
      %v444 = vadd.f32 0.0, %v443
      %445 = vmatmul.f32.gmra.mxu0 %v313
      %v446 = vpop.f32.mrf.mxu0
      %v447 = vadd.f32 0.0, %v446
      %448 = vmatmul.f32.gmra.mxu0 %v316
      %v449 = vpop.f32.mrf.mxu0
      %v450 = vadd.f32 0.0, %v449
      %451 = vmatmul.f32.gmra.mxu0 %v319
      %v452 = vpop.f32.mrf.mxu0
      %v453 = vadd.f32 0.0, %v452
      %454 = vmatmul.f32.gmra.mxu0 %v322
      %v455 = vpop.f32.mrf.mxu0
      %v456 = vadd.f32 0.0, %v455
      %457 = vmatmul.f32.gmra.mxu0 %v325
      %v458 = vpop.f32.mrf.mxu0
      %v459 = vadd.f32 0.0, %v458
      %460 = vmatmul.f32.gmra.mxu0 %v328
      %v461 = vpop.f32.mrf.mxu0
      %v462 = vadd.f32 0.0, %v461
      %463 = vmatmul.f32.gmra.mxu0 %v331
      %v464 = vpop.f32.mrf.mxu0
      %v465 = vadd.f32 0.0, %v464
      %466 = vmatmul.f32.gmra.mxu0 %v334
      %v467 = vpop.f32.mrf.mxu0
      %v468 = vadd.f32 0.0, %v467
      %469 = vmatmul.f32.gmra.mxu0 %v337
      %v470 = vpop.f32.mrf.mxu0
      %v471 = vadd.f32 0.0, %v470
      %472 = vmatmul.f32.gmra.mxu0 %v340
      %v473 = vpop.f32.mrf.mxu0
      %v474 = vadd.f32 0.0, %v473
      %475 = vmatmul.f32.gmra.mxu0 %v343
      %v476 = vpop.f32.mrf.mxu0
      %v477 = vadd.f32 0.0, %v476
      %478 = vmatmul.f32.gmra.mxu0 %v346
      %v479 = vpop.f32.mrf.mxu0
      %v480 = vadd.f32 0.0, %v479
      %481 = vmatmul.f32.gmra.mxu0 %v349
      %v482 = vpop.f32.mrf.mxu0
      %v483 = vadd.f32 0.0, %v482
      %484 = vmatmul.f32.gmra.mxu0 %v352
      %v485 = vpop.f32.mrf.mxu0
      %v486 = vadd.f32 0.0, %v485
      %487 = vmatmul.f32.gmra.mxu0 %v355
      %v488 = vpop.f32.mrf.mxu0
      %v489 = vadd.f32 0.0, %v488
      %490 = vmatmul.f32.gmra.mxu0 %v358
      %v491 = vpop.f32.mrf.mxu0
      %v492 = vadd.f32 0.0, %v491
      %493 = vmatmul.f32.gmra.mxu0 %v361
      %v494 = vpop.f32.mrf.mxu0
      %v495 = vadd.f32 0.0, %v494
      %496 = vmatmul.f32.gmra.mxu0 %v364
      %v497 = vpop.f32.mrf.mxu0
      %v498 = vadd.f32 0.0, %v497
      %499 = vmatmul.f32.gmra.mxu0 %v367
      %v500 = vpop.f32.mrf.mxu0
      %v501 = vadd.f32 0.0, %v500
      %502 = vmatmul.f32.gmra.mxu0 %v370
      %v503 = vpop.f32.mrf.mxu0
      %v504 = vadd.f32 0.0, %v503
      %505 = vmatmul.f32.gmra.mxu0 %v373
      %v506 = vpop.f32.mrf.mxu0
      %v507 = vadd.f32 0.0, %v506
      %508 = vmatmul.f32.gmra.mxu0 %v376
      %v509 = vpop.f32.mrf.mxu0
      %v510 = vadd.f32 0.0, %v509
      %511 = vmatmul.f32.gmra.mxu0 %v379
      %v512 = vpop.f32.mrf.mxu0
      %v513 = vadd.f32 0.0, %v512
      %514 = vmatmul.f32.gmra.mxu0 %v382
      %v515 = vpop.f32.mrf.mxu0
      %v516 = vadd.f32 0.0, %v515
      %517 = vmatmul.f32.gmra.mxu0 %v385
      %v518 = vpop.f32.mrf.mxu0
      %v519 = vadd.f32 0.0, %v518
      %520 = vmatmul.f32.gmra.mxu0 %v388
      %v521 = vpop.f32.mrf.mxu0
      %v522 = vadd.f32 0.0, %v521
      %523 = vmatmul.f32.gmra.mxu0 %v391
      %v524 = vpop.f32.mrf.mxu0
      %v525 = vadd.f32 0.0, %v524
      %526 = vmatmul.f32.gmra.mxu0 %v394
      %v527 = vpop.f32.mrf.mxu0
      %v528 = vadd.f32 0.0, %v527
      %529 = vmatmul.f32.gmra.mxu0 %v397
      %v530 = vpop.f32.mrf.mxu0
      %v531 = vadd.f32 0.0, %v530
      %532 = vmatmul.f32.gmra.mxu0 %v400
      %v533 = vpop.f32.mrf.mxu0
      %v534 = vadd.f32 0.0, %v533
      %535 = vmatmul.f32.gmra.mxu0 %v403
      %v536 = vpop.f32.mrf.mxu0
      %v537 = vadd.f32 0.0, %v536
      %538 = vmatmul.f32.gmra.mxu0 %v406
      %v539 = vpop.f32.mrf.mxu0
      %v540 = vadd.f32 0.0, %v539
      %541 = vmatmul.f32.gmra.mxu0 %v409
      %v542 = vpop.f32.mrf.mxu0
      %v543 = vadd.f32 0.0, %v542
      %544 = vmatmul.f32.gmra.mxu0 %v412
      %v545 = vpop.f32.mrf.mxu0
      %v546 = vadd.f32 0.0, %v545
      %547 = vmatmul.f32.gmra.mxu0 %v415
      %v548 = vpop.f32.mrf.mxu0
      %v549 = vadd.f32 0.0, %v548
      %550 = vmatmul.f32.gmra.mxu0 %v418
      %v551 = vpop.f32.mrf.mxu0
      %v552 = vadd.f32 0.0, %v551
      %553 = vdwg.mxu0
      %554 = vmatpush.msra.mxu0 0.0
      %555 = vmatpush.msra.mxu0 0.0
      %556 = vmatpush.msra.mxu0 0.0
      %557 = vmatpush.msra.mxu0 %v223
      %558 = vmatpush.msra.mxu0 %v221
      %559 = vmatpush.msra.mxu0 %v219
      %560 = vmatpush.msra.mxu0 %v217
      %561 = vmatpush.msra.mxu0 %v215
      %562 = vmatpush.msra.mxu0 %v213
      %563 = vmatpush.msra.mxu0 %v211
      %564 = vmatpush.msra.mxu0 %v209
      %565 = vmatpush.msra.mxu0 %v207
      %566 = vmatpush.msra.mxu0 %v205
      %567 = vmatpush.msra.mxu0 %v203
      %568 = vmatpush.msra.mxu0 %v201
      %569 = vmatpush.msra.mxu0 %v199
      %570 = vmatmul.f32.gmra.mxu0 %v304
      %v571 = vpop.f32.mrf.mxu0
      %v572 = vadd.f32 0.0, %v571
      %573 = vmatmul.f32.gmra.mxu0 %v307
      %v574 = vpop.f32.mrf.mxu0
      %v575 = vadd.f32 0.0, %v574
      %576 = vmatmul.f32.gmra.mxu0 %v310
      %v577 = vpop.f32.mrf.mxu0
      %v578 = vadd.f32 0.0, %v577
      %579 = vmatmul.f32.gmra.mxu0 %v313
      %v580 = vpop.f32.mrf.mxu0
      %v581 = vadd.f32 0.0, %v580
      %582 = vmatmul.f32.gmra.mxu0 %v316
      %v583 = vpop.f32.mrf.mxu0
      %v584 = vadd.f32 0.0, %v583
      %585 = vmatmul.f32.gmra.mxu0 %v319
      %v586 = vpop.f32.mrf.mxu0
      %v587 = vadd.f32 0.0, %v586
      %588 = vmatmul.f32.gmra.mxu0 %v322
      %v589 = vpop.f32.mrf.mxu0
      %v590 = vadd.f32 0.0, %v589
      %591 = vmatmul.f32.gmra.mxu0 %v325
      %v592 = vpop.f32.mrf.mxu0
      %v593 = vadd.f32 0.0, %v592
      %594 = vmatmul.f32.gmra.mxu0 %v328
      %v595 = vpop.f32.mrf.mxu0
      %v596 = vadd.f32 0.0, %v595
      %597 = vmatmul.f32.gmra.mxu0 %v331
      %v598 = vpop.f32.mrf.mxu0
      %v599 = vadd.f32 0.0, %v598
      %600 = vmatmul.f32.gmra.mxu0 %v334
      %v601 = vpop.f32.mrf.mxu0
      %v602 = vadd.f32 0.0, %v601
      %603 = vmatmul.f32.gmra.mxu0 %v337
      %v604 = vpop.f32.mrf.mxu0
      %v605 = vadd.f32 0.0, %v604
      %606 = vmatmul.f32.gmra.mxu0 %v340
      %v607 = vpop.f32.mrf.mxu0
      %v608 = vadd.f32 0.0, %v607
      %609 = vmatmul.f32.gmra.mxu0 %v343
      %v610 = vpop.f32.mrf.mxu0
      %v611 = vadd.f32 0.0, %v610
      %612 = vmatmul.f32.gmra.mxu0 %v346
      %v613 = vpop.f32.mrf.mxu0
      %v614 = vadd.f32 0.0, %v613
      %615 = vmatmul.f32.gmra.mxu0 %v349
      %v616 = vpop.f32.mrf.mxu0
      %v617 = vadd.f32 0.0, %v616
      %618 = vmatmul.f32.gmra.mxu0 %v352
      %v619 = vpop.f32.mrf.mxu0
      %v620 = vadd.f32 0.0, %v619
      %621 = vmatmul.f32.gmra.mxu0 %v355
      %v622 = vpop.f32.mrf.mxu0
      %v623 = vadd.f32 0.0, %v622
      %624 = vmatmul.f32.gmra.mxu0 %v358
      %v625 = vpop.f32.mrf.mxu0
      %v626 = vadd.f32 0.0, %v625
      %627 = vmatmul.f32.gmra.mxu0 %v361
      %v628 = vpop.f32.mrf.mxu0
      %v629 = vadd.f32 0.0, %v628
      %630 = vmatmul.f32.gmra.mxu0 %v364
      %v631 = vpop.f32.mrf.mxu0
      %v632 = vadd.f32 0.0, %v631
      %633 = vmatmul.f32.gmra.mxu0 %v367
      %v634 = vpop.f32.mrf.mxu0
      %v635 = vadd.f32 0.0, %v634
      %636 = vmatmul.f32.gmra.mxu0 %v370
      %v637 = vpop.f32.mrf.mxu0
      %v638 = vadd.f32 0.0, %v637
      %639 = vmatmul.f32.gmra.mxu0 %v373
      %v640 = vpop.f32.mrf.mxu0
      %v641 = vadd.f32 0.0, %v640
      %642 = vmatmul.f32.gmra.mxu0 %v376
      %v643 = vpop.f32.mrf.mxu0
      %v644 = vadd.f32 0.0, %v643
      %645 = vmatmul.f32.gmra.mxu0 %v379
      %v646 = vpop.f32.mrf.mxu0
      %v647 = vadd.f32 0.0, %v646
      %648 = vmatmul.f32.gmra.mxu0 %v382
      %v649 = vpop.f32.mrf.mxu0
      %v650 = vadd.f32 0.0, %v649
      %651 = vmatmul.f32.gmra.mxu0 %v385
      %v652 = vpop.f32.mrf.mxu0
      %v653 = vadd.f32 0.0, %v652
      %654 = vmatmul.f32.gmra.mxu0 %v388
      %v655 = vpop.f32.mrf.mxu0
      %v656 = vadd.f32 0.0, %v655
      %657 = vmatmul.f32.gmra.mxu0 %v391
      %v658 = vpop.f32.mrf.mxu0
      %v659 = vadd.f32 0.0, %v658
      %660 = vmatmul.f32.gmra.mxu0 %v394
      %v661 = vpop.f32.mrf.mxu0
      %v662 = vadd.f32 0.0, %v661
      %663 = vmatmul.f32.gmra.mxu0 %v397
      %v664 = vpop.f32.mrf.mxu0
      %v665 = vadd.f32 0.0, %v664
      %666 = vmatmul.f32.gmra.mxu0 %v400
      %v667 = vpop.f32.mrf.mxu0
      %v668 = vadd.f32 0.0, %v667
      %669 = vmatmul.f32.gmra.mxu0 %v403
      %v670 = vpop.f32.mrf.mxu0
      %v671 = vadd.f32 0.0, %v670
      %672 = vmatmul.f32.gmra.mxu0 %v406
      %v673 = vpop.f32.mrf.mxu0
      %v674 = vadd.f32 0.0, %v673
      %675 = vmatmul.f32.gmra.mxu0 %v409
      %v676 = vpop.f32.mrf.mxu0
      %v677 = vadd.f32 0.0, %v676
      %678 = vmatmul.f32.gmra.mxu0 %v412
      %v679 = vpop.f32.mrf.mxu0
      %v680 = vadd.f32 0.0, %v679
      %681 = vmatmul.f32.gmra.mxu0 %v415
      %v682 = vpop.f32.mrf.mxu0
      %v683 = vadd.f32 0.0, %v682
      %684 = vmatmul.f32.gmra.mxu0 %v418
      %v685 = vpop.f32.mrf.mxu0
      %v686 = vadd.f32 0.0, %v685
      %687 = vdwg.mxu0
      %vm688 = vcmask 556032
      %v689 = vsel %vm688, %v572, 0.0
      %v690 = vadd.f32 %v438, %v689
      %691 = vadd.xlane.f32.xlu0 %v690
      %v692 = vpop.xlane.xlu0 %691
      %v693 = vsel %vm688, %v575, 0.0
      %v694 = vadd.f32 %v441, %v693
      %695 = vadd.xlane.f32.xlu0 %v694
      %v696 = vpop.xlane.xlu0 %695
      %v697 = vsel %vm688, %v578, 0.0
      %v698 = vadd.f32 %v444, %v697
      %699 = vadd.xlane.f32.xlu0 %v698
      %v700 = vpop.xlane.xlu0 %699
      %v701 = vsel %vm688, %v581, 0.0
      %v702 = vadd.f32 %v447, %v701
      %703 = vadd.xlane.f32.xlu0 %v702
      %v704 = vpop.xlane.xlu0 %703
      %v705 = vsel %vm688, %v584, 0.0
      %v706 = vadd.f32 %v450, %v705
      %707 = vadd.xlane.f32.xlu0 %v706
      %v708 = vpop.xlane.xlu0 %707
      %v709 = vsel %vm688, %v587, 0.0
      %v710 = vadd.f32 %v453, %v709
      %711 = vadd.xlane.f32.xlu0 %v710
      %v712 = vpop.xlane.xlu0 %711
      %v713 = vsel %vm688, %v590, 0.0
      %v714 = vadd.f32 %v456, %v713
      %715 = vadd.xlane.f32.xlu0 %v714
      %v716 = vpop.xlane.xlu0 %715
      %v717 = vsel %vm688, %v593, 0.0
      %v718 = vadd.f32 %v459, %v717
      %719 = vadd.xlane.f32.xlu0 %v718
      %v720 = vpop.xlane.xlu0 %719
      %v721 = vsel %vm688, %v596, 0.0
      %v722 = vadd.f32 %v462, %v721
      %723 = vadd.xlane.f32.xlu0 %v722
      %v724 = vpop.xlane.xlu0 %723
      %v725 = vsel %vm688, %v599, 0.0
      %v726 = vadd.f32 %v465, %v725
      %727 = vadd.xlane.f32.xlu0 %v726
      %v728 = vpop.xlane.xlu0 %727
      %v729 = vsel %vm688, %v602, 0.0
      %v730 = vadd.f32 %v468, %v729
      %731 = vadd.xlane.f32.xlu0 %v730
      %v732 = vpop.xlane.xlu0 %731
      %v733 = vsel %vm688, %v605, 0.0
      %v734 = vadd.f32 %v471, %v733
      %735 = vadd.xlane.f32.xlu0 %v734
      %v736 = vpop.xlane.xlu0 %735
      %v737 = vsel %vm688, %v608, 0.0
      %v738 = vadd.f32 %v474, %v737
      %739 = vadd.xlane.f32.xlu0 %v738
      %v740 = vpop.xlane.xlu0 %739
      %v741 = vsel %vm688, %v611, 0.0
      %v742 = vadd.f32 %v477, %v741
      %743 = vadd.xlane.f32.xlu0 %v742
      %v744 = vpop.xlane.xlu0 %743
      %v745 = vsel %vm688, %v614, 0.0
      %v746 = vadd.f32 %v480, %v745
      %747 = vadd.xlane.f32.xlu0 %v746
      %v748 = vpop.xlane.xlu0 %747
      %v749 = vsel %vm688, %v617, 0.0
      %v750 = vadd.f32 %v483, %v749
      %751 = vadd.xlane.f32.xlu0 %v750
      %v752 = vpop.xlane.xlu0 %751
      %v753 = vsel %vm688, %v620, 0.0
      %v754 = vadd.f32 %v486, %v753
      %755 = vadd.xlane.f32.xlu0 %v754
      %v756 = vpop.xlane.xlu0 %755
      %v757 = vsel %vm688, %v623, 0.0
      %v758 = vadd.f32 %v489, %v757
      %759 = vadd.xlane.f32.xlu0 %v758
      %v760 = vpop.xlane.xlu0 %759
      %v761 = vsel %vm688, %v626, 0.0
      %v762 = vadd.f32 %v492, %v761
      %763 = vadd.xlane.f32.xlu0 %v762
      %v764 = vpop.xlane.xlu0 %763
      %v765 = vsel %vm688, %v629, 0.0
      %v766 = vadd.f32 %v495, %v765
      %767 = vadd.xlane.f32.xlu0 %v766
      %v768 = vpop.xlane.xlu0 %767
      %v769 = vsel %vm688, %v632, 0.0
      %v770 = vadd.f32 %v498, %v769
      %771 = vadd.xlane.f32.xlu0 %v770
      %v772 = vpop.xlane.xlu0 %771
      %v773 = vsel %vm688, %v635, 0.0
      %v774 = vadd.f32 %v501, %v773
      %775 = vadd.xlane.f32.xlu0 %v774
      %v776 = vpop.xlane.xlu0 %775
      %v777 = vsel %vm688, %v638, 0.0
      %v778 = vadd.f32 %v504, %v777
      %779 = vadd.xlane.f32.xlu0 %v778
      %v780 = vpop.xlane.xlu0 %779
      %v781 = vsel %vm688, %v641, 0.0
      %v782 = vadd.f32 %v507, %v781
      %783 = vadd.xlane.f32.xlu0 %v782
      %v784 = vpop.xlane.xlu0 %783
      %v785 = vsel %vm688, %v644, 0.0
      %v786 = vadd.f32 %v510, %v785
      %787 = vadd.xlane.f32.xlu0 %v786
      %v788 = vpop.xlane.xlu0 %787
      %v789 = vsel %vm688, %v647, 0.0
      %v790 = vadd.f32 %v513, %v789
      %791 = vadd.xlane.f32.xlu0 %v790
      %v792 = vpop.xlane.xlu0 %791
      %v793 = vsel %vm688, %v650, 0.0
      %v794 = vadd.f32 %v516, %v793
      %795 = vadd.xlane.f32.xlu0 %v794
      %v796 = vpop.xlane.xlu0 %795
      %v797 = vsel %vm688, %v653, 0.0
      %v798 = vadd.f32 %v519, %v797
      %799 = vadd.xlane.f32.xlu0 %v798
      %v800 = vpop.xlane.xlu0 %799
      %v801 = vsel %vm688, %v656, 0.0
      %v802 = vadd.f32 %v522, %v801
      %803 = vadd.xlane.f32.xlu0 %v802
      %v804 = vpop.xlane.xlu0 %803
      %v805 = vsel %vm688, %v659, 0.0
      %v806 = vadd.f32 %v525, %v805
      %807 = vadd.xlane.f32.xlu0 %v806
      %v808 = vpop.xlane.xlu0 %807
      %v809 = vsel %vm688, %v662, 0.0
      %v810 = vadd.f32 %v528, %v809
      %811 = vadd.xlane.f32.xlu0 %v810
      %v812 = vpop.xlane.xlu0 %811
      %v813 = vsel %vm688, %v665, 0.0
      %v814 = vadd.f32 %v531, %v813
      %815 = vadd.xlane.f32.xlu0 %v814
      %v816 = vpop.xlane.xlu0 %815
      %v817 = vsel %vm688, %v668, 0.0
      %v818 = vadd.f32 %v534, %v817
      %819 = vadd.xlane.f32.xlu0 %v818
      %v820 = vpop.xlane.xlu0 %819
      %v821 = vsel %vm688, %v671, 0.0
      %v822 = vadd.f32 %v537, %v821
      %823 = vadd.xlane.f32.xlu0 %v822
      %v824 = vpop.xlane.xlu0 %823
      %v825 = vsel %vm688, %v674, 0.0
      %v826 = vadd.f32 %v540, %v825
      %827 = vadd.xlane.f32.xlu0 %v826
      %v828 = vpop.xlane.xlu0 %827
      %v829 = vsel %vm688, %v677, 0.0
      %v830 = vadd.f32 %v543, %v829
      %831 = vadd.xlane.f32.xlu0 %v830
      %v832 = vpop.xlane.xlu0 %831
      %v833 = vsel %vm688, %v680, 0.0
      %v834 = vadd.f32 %v546, %v833
      %835 = vadd.xlane.f32.xlu0 %v834
      %v836 = vpop.xlane.xlu0 %835
      %v837 = vsel %vm688, %v683, 0.0
      %v838 = vadd.f32 %v549, %v837
      %839 = vadd.xlane.f32.xlu0 %v838
      %v840 = vpop.xlane.xlu0 %839
      %v841 = vsel %vm688, %v686, 0.0
      %v842 = vadd.f32 %v552, %v841
      %843 = vadd.xlane.f32.xlu0 %v842
      %v844 = vpop.xlane.xlu0 %843
      %v845 = vmul.f32 %v692, 0.0051020407
      %v846 = vmul.f32 %v696, 0.0051020407
      %v847 = vmul.f32 %v700, 0.0051020407
      %v848 = vmul.f32 %v704, 0.0051020407
      %v849 = vmul.f32 %v708, 0.0051020407
      %v850 = vmul.f32 %v712, 0.0051020407
      %v851 = vmul.f32 %v716, 0.0051020407
      %v852 = vmul.f32 %v720, 0.0051020407
      %v853 = vmul.f32 %v724, 0.0051020407
      %v854 = vmul.f32 %v728, 0.0051020407
      %v855 = vmul.f32 %v732, 0.0051020407
      %v856 = vmul.f32 %v736, 0.0051020407
      %v857 = vmul.f32 %v740, 0.0051020407
      %v858 = vmul.f32 %v744, 0.0051020407
      %v859 = vmul.f32 %v748, 0.0051020407
      %v860 = vmul.f32 %v752, 0.0051020407
      %v861 = vmul.f32 %v756, 0.0051020407
      %v862 = vmul.f32 %v760, 0.0051020407
      %v863 = vmul.f32 %v764, 0.0051020407
      %v864 = vmul.f32 %v768, 0.0051020407
      %v865 = vmul.f32 %v772, 0.0051020407
      %v866 = vmul.f32 %v776, 0.0051020407
      %v867 = vmul.f32 %v780, 0.0051020407
      %v868 = vmul.f32 %v784, 0.0051020407
      %v869 = vmul.f32 %v788, 0.0051020407
      %v870 = vmul.f32 %v792, 0.0051020407
      %v871 = vmul.f32 %v796, 0.0051020407
      %v872 = vmul.f32 %v800, 0.0051020407
      %v873 = vmul.f32 %v804, 0.0051020407
      %v874 = vmul.f32 %v808, 0.0051020407
      %v875 = vmul.f32 %v812, 0.0051020407
      %v876 = vmul.f32 %v816, 0.0051020407
      %v877 = vmul.f32 %v820, 0.0051020407
      %v878 = vmul.f32 %v824, 0.0051020407
      %v879 = vmul.f32 %v828, 0.0051020407
      %v880 = vmul.f32 %v832, 0.0051020407
      %v881 = vmul.f32 %v836, 0.0051020407
      %v882 = vmul.f32 %v840, 0.0051020407
      %v883 = vmul.f32 %v844, 0.0051020407
      %v884 = vsub.f32 %v438, %v845
      %v885 = vsub.f32 %v572, %v845
      %v886 = vsub.f32 %v441, %v846
      %v887 = vsub.f32 %v575, %v846
      %v888 = vsub.f32 %v444, %v847
      %v889 = vsub.f32 %v578, %v847
      %v890 = vsub.f32 %v447, %v848
      %v891 = vsub.f32 %v581, %v848
      %v892 = vsub.f32 %v450, %v849
      %v893 = vsub.f32 %v584, %v849
      %v894 = vsub.f32 %v453, %v850
      %v895 = vsub.f32 %v587, %v850
      %v896 = vsub.f32 %v456, %v851
      %v897 = vsub.f32 %v590, %v851
      %v898 = vsub.f32 %v459, %v852
      %v899 = vsub.f32 %v593, %v852
      %v900 = vsub.f32 %v462, %v853
      %v901 = vsub.f32 %v596, %v853
      %v902 = vsub.f32 %v465, %v854
      %v903 = vsub.f32 %v599, %v854
      %v904 = vsub.f32 %v468, %v855
      %v905 = vsub.f32 %v602, %v855
      %v906 = vsub.f32 %v471, %v856
      %v907 = vsub.f32 %v605, %v856
      %v908 = vsub.f32 %v474, %v857
      %v909 = vsub.f32 %v608, %v857
      %v910 = vsub.f32 %v477, %v858
      %v911 = vsub.f32 %v611, %v858
      %v912 = vsub.f32 %v480, %v859
      %v913 = vsub.f32 %v614, %v859
      %v914 = vsub.f32 %v483, %v860
      %v915 = vsub.f32 %v617, %v860
      %v916 = vsub.f32 %v486, %v861
      %v917 = vsub.f32 %v620, %v861
      %v918 = vsub.f32 %v489, %v862
      %v919 = vsub.f32 %v623, %v862
      %v920 = vsub.f32 %v492, %v863
      %v921 = vsub.f32 %v626, %v863
      %v922 = vsub.f32 %v495, %v864
      %v923 = vsub.f32 %v629, %v864
      %v924 = vsub.f32 %v498, %v865
      %v925 = vsub.f32 %v632, %v865
      %v926 = vsub.f32 %v501, %v866
      %v927 = vsub.f32 %v635, %v866
      %v928 = vsub.f32 %v504, %v867
      %v929 = vsub.f32 %v638, %v867
      %v930 = vsub.f32 %v507, %v868
      %v931 = vsub.f32 %v641, %v868
      %v932 = vsub.f32 %v510, %v869
      %v933 = vsub.f32 %v644, %v869
      %v934 = vsub.f32 %v513, %v870
      %v935 = vsub.f32 %v647, %v870
      %v936 = vsub.f32 %v516, %v871
      %v937 = vsub.f32 %v650, %v871
      %v938 = vsub.f32 %v519, %v872
      %v939 = vsub.f32 %v653, %v872
      %v940 = vsub.f32 %v522, %v873
      %v941 = vsub.f32 %v656, %v873
      %v942 = vsub.f32 %v525, %v874
      %v943 = vsub.f32 %v659, %v874
      %v944 = vsub.f32 %v528, %v875
      %v945 = vsub.f32 %v662, %v875
      %v946 = vsub.f32 %v531, %v876
      %v947 = vsub.f32 %v665, %v876
      %v948 = vsub.f32 %v534, %v877
      %v949 = vsub.f32 %v668, %v877
      %v950 = vsub.f32 %v537, %v878
      %v951 = vsub.f32 %v671, %v878
      %v952 = vsub.f32 %v540, %v879
      %v953 = vsub.f32 %v674, %v879
      %v954 = vsub.f32 %v543, %v880
      %v955 = vsub.f32 %v677, %v880
      %v956 = vsub.f32 %v546, %v881
      %v957 = vsub.f32 %v680, %v881
      %v958 = vsub.f32 %v549, %v882
      %v959 = vsub.f32 %v683, %v882
      %v960 = vsub.f32 %v552, %v883
      %v961 = vsub.f32 %v686, %v883
      %v962 = vmul.f32 %v884, %v884
      %v963 = vmul.f32 %v885, %v885
      %v964 = vmul.f32 %v886, %v886
      %v965 = vmul.f32 %v887, %v887
      %v966 = vmul.f32 %v888, %v888
      %v967 = vmul.f32 %v889, %v889
      %v968 = vmul.f32 %v890, %v890
      %v969 = vmul.f32 %v891, %v891
      %v970 = vmul.f32 %v892, %v892
      %v971 = vmul.f32 %v893, %v893
      %v972 = vmul.f32 %v894, %v894
      %v973 = vmul.f32 %v895, %v895
      %v974 = vmul.f32 %v896, %v896
      %v975 = vmul.f32 %v897, %v897
      %v976 = vmul.f32 %v898, %v898
      %v977 = vmul.f32 %v899, %v899
      %v978 = vmul.f32 %v900, %v900
      %v979 = vmul.f32 %v901, %v901
      %v980 = vmul.f32 %v902, %v902
      %v981 = vmul.f32 %v903, %v903
      %v982 = vmul.f32 %v904, %v904
      %v983 = vmul.f32 %v905, %v905
      %v984 = vmul.f32 %v906, %v906
      %v985 = vmul.f32 %v907, %v907
      %v986 = vmul.f32 %v908, %v908
      %v987 = vmul.f32 %v909, %v909
      %v988 = vmul.f32 %v910, %v910
      %v989 = vmul.f32 %v911, %v911
      %v990 = vmul.f32 %v912, %v912
      %v991 = vmul.f32 %v913, %v913
      %v992 = vmul.f32 %v914, %v914
      %v993 = vmul.f32 %v915, %v915
      %v994 = vmul.f32 %v916, %v916
      %v995 = vmul.f32 %v917, %v917
      %v996 = vmul.f32 %v918, %v918
      %v997 = vmul.f32 %v919, %v919
      %v998 = vmul.f32 %v920, %v920
      %v999 = vmul.f32 %v921, %v921
      %v1000 = vmul.f32 %v922, %v922
      %v1001 = vmul.f32 %v923, %v923
      %v1002 = vmul.f32 %v924, %v924
      %v1003 = vmul.f32 %v925, %v925
      %v1004 = vmul.f32 %v926, %v926
      %v1005 = vmul.f32 %v927, %v927
      %v1006 = vmul.f32 %v928, %v928
      %v1007 = vmul.f32 %v929, %v929
      %v1008 = vmul.f32 %v930, %v930
      %v1009 = vmul.f32 %v931, %v931
      %v1010 = vmul.f32 %v932, %v932
      %v1011 = vmul.f32 %v933, %v933
      %v1012 = vmul.f32 %v934, %v934
      %v1013 = vmul.f32 %v935, %v935
      %v1014 = vmul.f32 %v936, %v936
      %v1015 = vmul.f32 %v937, %v937
      %v1016 = vmul.f32 %v938, %v938
      %v1017 = vmul.f32 %v939, %v939
      %v1018 = vmul.f32 %v940, %v940
      %v1019 = vmul.f32 %v941, %v941
      %v1020 = vmul.f32 %v942, %v942
      %v1021 = vmul.f32 %v943, %v943
      %v1022 = vmul.f32 %v944, %v944
      %v1023 = vmul.f32 %v945, %v945
      %v1024 = vmul.f32 %v946, %v946
      %v1025 = vmul.f32 %v947, %v947
      %v1026 = vmul.f32 %v948, %v948
      %v1027 = vmul.f32 %v949, %v949
      %v1028 = vmul.f32 %v950, %v950
      %v1029 = vmul.f32 %v951, %v951
      %v1030 = vmul.f32 %v952, %v952
      %v1031 = vmul.f32 %v953, %v953
      %v1032 = vmul.f32 %v954, %v954
      %v1033 = vmul.f32 %v955, %v955
      %v1034 = vmul.f32 %v956, %v956
      %v1035 = vmul.f32 %v957, %v957
      %v1036 = vmul.f32 %v958, %v958
      %v1037 = vmul.f32 %v959, %v959
      %v1038 = vmul.f32 %v960, %v960
      %v1039 = vmul.f32 %v961, %v961
      %v1040 = vsel %vm688, %v963, 0.0
      %v1041 = vadd.f32 %v962, %v1040
      %1042 = vadd.xlane.f32.xlu0 %v1041
      %v1043 = vpop.xlane.xlu0 %1042
      %v1044 = vsel %vm688, %v965, 0.0
      %v1045 = vadd.f32 %v964, %v1044
      %1046 = vadd.xlane.f32.xlu0 %v1045
      %v1047 = vpop.xlane.xlu0 %1046
      %v1048 = vsel %vm688, %v967, 0.0
      %v1049 = vadd.f32 %v966, %v1048
      %1050 = vadd.xlane.f32.xlu0 %v1049
      %v1051 = vpop.xlane.xlu0 %1050
      %v1052 = vsel %vm688, %v969, 0.0
      %v1053 = vadd.f32 %v968, %v1052
      %1054 = vadd.xlane.f32.xlu0 %v1053
      %v1055 = vpop.xlane.xlu0 %1054
      %v1056 = vsel %vm688, %v971, 0.0
      %v1057 = vadd.f32 %v970, %v1056
      %1058 = vadd.xlane.f32.xlu0 %v1057
      %v1059 = vpop.xlane.xlu0 %1058
      %v1060 = vsel %vm688, %v973, 0.0
      %v1061 = vadd.f32 %v972, %v1060
      %1062 = vadd.xlane.f32.xlu0 %v1061
      %v1063 = vpop.xlane.xlu0 %1062
      %v1064 = vsel %vm688, %v975, 0.0
      %v1065 = vadd.f32 %v974, %v1064
      %1066 = vadd.xlane.f32.xlu0 %v1065
      %v1067 = vpop.xlane.xlu0 %1066
      %v1068 = vsel %vm688, %v977, 0.0
      %v1069 = vadd.f32 %v976, %v1068
      %1070 = vadd.xlane.f32.xlu0 %v1069
      %v1071 = vpop.xlane.xlu0 %1070
      %v1072 = vsel %vm688, %v979, 0.0
      %v1073 = vadd.f32 %v978, %v1072
      %1074 = vadd.xlane.f32.xlu0 %v1073
      %v1075 = vpop.xlane.xlu0 %1074
      %v1076 = vsel %vm688, %v981, 0.0
      %v1077 = vadd.f32 %v980, %v1076
      %1078 = vadd.xlane.f32.xlu0 %v1077
      %v1079 = vpop.xlane.xlu0 %1078
      %v1080 = vsel %vm688, %v983, 0.0
      %v1081 = vadd.f32 %v982, %v1080
      %1082 = vadd.xlane.f32.xlu0 %v1081
      %v1083 = vpop.xlane.xlu0 %1082
      %v1084 = vsel %vm688, %v985, 0.0
      %v1085 = vadd.f32 %v984, %v1084
      %1086 = vadd.xlane.f32.xlu0 %v1085
      %v1087 = vpop.xlane.xlu0 %1086
      %v1088 = vsel %vm688, %v987, 0.0
      %v1089 = vadd.f32 %v986, %v1088
      %1090 = vadd.xlane.f32.xlu0 %v1089
      %v1091 = vpop.xlane.xlu0 %1090
      %v1092 = vsel %vm688, %v989, 0.0
      %v1093 = vadd.f32 %v988, %v1092
      %1094 = vadd.xlane.f32.xlu0 %v1093
      %v1095 = vpop.xlane.xlu0 %1094
      %v1096 = vsel %vm688, %v991, 0.0
      %v1097 = vadd.f32 %v990, %v1096
      %1098 = vadd.xlane.f32.xlu0 %v1097
      %v1099 = vpop.xlane.xlu0 %1098
      %v1100 = vsel %vm688, %v993, 0.0
      %v1101 = vadd.f32 %v992, %v1100
      %1102 = vadd.xlane.f32.xlu0 %v1101
      %v1103 = vpop.xlane.xlu0 %1102
      %v1104 = vsel %vm688, %v995, 0.0
      %v1105 = vadd.f32 %v994, %v1104
      %1106 = vadd.xlane.f32.xlu0 %v1105
      %v1107 = vpop.xlane.xlu0 %1106
      %v1108 = vsel %vm688, %v997, 0.0
      %v1109 = vadd.f32 %v996, %v1108
      %1110 = vadd.xlane.f32.xlu0 %v1109
      %v1111 = vpop.xlane.xlu0 %1110
      %v1112 = vsel %vm688, %v999, 0.0
      %v1113 = vadd.f32 %v998, %v1112
      %1114 = vadd.xlane.f32.xlu0 %v1113
      %v1115 = vpop.xlane.xlu0 %1114
      %v1116 = vsel %vm688, %v1001, 0.0
      %v1117 = vadd.f32 %v1000, %v1116
      %1118 = vadd.xlane.f32.xlu0 %v1117
      %v1119 = vpop.xlane.xlu0 %1118
      %v1120 = vsel %vm688, %v1003, 0.0
      %v1121 = vadd.f32 %v1002, %v1120
      %1122 = vadd.xlane.f32.xlu0 %v1121
      %v1123 = vpop.xlane.xlu0 %1122
      %v1124 = vsel %vm688, %v1005, 0.0
      %v1125 = vadd.f32 %v1004, %v1124
      %1126 = vadd.xlane.f32.xlu0 %v1125
      %v1127 = vpop.xlane.xlu0 %1126
      %v1128 = vsel %vm688, %v1007, 0.0
      %v1129 = vadd.f32 %v1006, %v1128
      %1130 = vadd.xlane.f32.xlu0 %v1129
      %v1131 = vpop.xlane.xlu0 %1130
      %v1132 = vsel %vm688, %v1009, 0.0
      %v1133 = vadd.f32 %v1008, %v1132
      %1134 = vadd.xlane.f32.xlu0 %v1133
      %v1135 = vpop.xlane.xlu0 %1134
      %v1136 = vsel %vm688, %v1011, 0.0
      %v1137 = vadd.f32 %v1010, %v1136
      %1138 = vadd.xlane.f32.xlu0 %v1137
      %v1139 = vpop.xlane.xlu0 %1138
      %v1140 = vsel %vm688, %v1013, 0.0
      %v1141 = vadd.f32 %v1012, %v1140
      %1142 = vadd.xlane.f32.xlu0 %v1141
      %v1143 = vpop.xlane.xlu0 %1142
      %v1144 = vsel %vm688, %v1015, 0.0
      %v1145 = vadd.f32 %v1014, %v1144
      %1146 = vadd.xlane.f32.xlu0 %v1145
      %v1147 = vpop.xlane.xlu0 %1146
      %v1148 = vsel %vm688, %v1017, 0.0
      %v1149 = vadd.f32 %v1016, %v1148
      %1150 = vadd.xlane.f32.xlu0 %v1149
      %v1151 = vpop.xlane.xlu0 %1150
      %v1152 = vsel %vm688, %v1019, 0.0
      %v1153 = vadd.f32 %v1018, %v1152
      %1154 = vadd.xlane.f32.xlu0 %v1153
      %v1155 = vpop.xlane.xlu0 %1154
      %v1156 = vsel %vm688, %v1021, 0.0
      %v1157 = vadd.f32 %v1020, %v1156
      %1158 = vadd.xlane.f32.xlu0 %v1157
      %v1159 = vpop.xlane.xlu0 %1158
      %v1160 = vsel %vm688, %v1023, 0.0
      %v1161 = vadd.f32 %v1022, %v1160
      %1162 = vadd.xlane.f32.xlu0 %v1161
      %v1163 = vpop.xlane.xlu0 %1162
      %v1164 = vsel %vm688, %v1025, 0.0
      %v1165 = vadd.f32 %v1024, %v1164
      %1166 = vadd.xlane.f32.xlu0 %v1165
      %v1167 = vpop.xlane.xlu0 %1166
      %v1168 = vsel %vm688, %v1027, 0.0
      %v1169 = vadd.f32 %v1026, %v1168
      %1170 = vadd.xlane.f32.xlu0 %v1169
      %v1171 = vpop.xlane.xlu0 %1170
      %v1172 = vsel %vm688, %v1029, 0.0
      %v1173 = vadd.f32 %v1028, %v1172
      %1174 = vadd.xlane.f32.xlu0 %v1173
      %v1175 = vpop.xlane.xlu0 %1174
      %v1176 = vsel %vm688, %v1031, 0.0
      %v1177 = vadd.f32 %v1030, %v1176
      %1178 = vadd.xlane.f32.xlu0 %v1177
      %v1179 = vpop.xlane.xlu0 %1178
      %v1180 = vsel %vm688, %v1033, 0.0
      %v1181 = vadd.f32 %v1032, %v1180
      %1182 = vadd.xlane.f32.xlu0 %v1181
      %v1183 = vpop.xlane.xlu0 %1182
      %v1184 = vsel %vm688, %v1035, 0.0
      %v1185 = vadd.f32 %v1034, %v1184
      %1186 = vadd.xlane.f32.xlu0 %v1185
      %v1187 = vpop.xlane.xlu0 %1186
      %v1188 = vsel %vm688, %v1037, 0.0
      %v1189 = vadd.f32 %v1036, %v1188
      %1190 = vadd.xlane.f32.xlu0 %v1189
      %v1191 = vpop.xlane.xlu0 %1190
      %v1192 = vsel %vm688, %v1039, 0.0
      %v1193 = vadd.f32 %v1038, %v1192
      %1194 = vadd.xlane.f32.xlu0 %v1193
      %v1195 = vpop.xlane.xlu0 %1194
      %v1196 = vmul.f32 %v1043, 0.0051020407
      %v1197 = vmul.f32 %v1047, 0.0051020407
      %v1198 = vmul.f32 %v1051, 0.0051020407
      %v1199 = vmul.f32 %v1055, 0.0051020407
      %v1200 = vmul.f32 %v1059, 0.0051020407
      %v1201 = vmul.f32 %v1063, 0.0051020407
      %v1202 = vmul.f32 %v1067, 0.0051020407
      %v1203 = vmul.f32 %v1071, 0.0051020407
      %v1204 = vmul.f32 %v1075, 0.0051020407
      %v1205 = vmul.f32 %v1079, 0.0051020407
      %v1206 = vmul.f32 %v1083, 0.0051020407
      %v1207 = vmul.f32 %v1087, 0.0051020407
      %v1208 = vmul.f32 %v1091, 0.0051020407
      %v1209 = vmul.f32 %v1095, 0.0051020407
      %v1210 = vmul.f32 %v1099, 0.0051020407
      %v1211 = vmul.f32 %v1103, 0.0051020407
      %v1212 = vmul.f32 %v1107, 0.0051020407
      %v1213 = vmul.f32 %v1111, 0.0051020407
      %v1214 = vmul.f32 %v1115, 0.0051020407
      %v1215 = vmul.f32 %v1119, 0.0051020407
      %v1216 = vmul.f32 %v1123, 0.0051020407
      %v1217 = vmul.f32 %v1127, 0.0051020407
      %v1218 = vmul.f32 %v1131, 0.0051020407
      %v1219 = vmul.f32 %v1135, 0.0051020407
      %v1220 = vmul.f32 %v1139, 0.0051020407
      %v1221 = vmul.f32 %v1143, 0.0051020407
      %v1222 = vmul.f32 %v1147, 0.0051020407
      %v1223 = vmul.f32 %v1151, 0.0051020407
      %v1224 = vmul.f32 %v1155, 0.0051020407
      %v1225 = vmul.f32 %v1159, 0.0051020407
      %v1226 = vmul.f32 %v1163, 0.0051020407
      %v1227 = vmul.f32 %v1167, 0.0051020407
      %v1228 = vmul.f32 %v1171, 0.0051020407
      %v1229 = vmul.f32 %v1175, 0.0051020407
      %v1230 = vmul.f32 %v1179, 0.0051020407
      %v1231 = vmul.f32 %v1183, 0.0051020407
      %v1232 = vmul.f32 %v1187, 0.0051020407
      %v1233 = vmul.f32 %v1191, 0.0051020407
      %v1234 = vmul.f32 %v1195, 0.0051020407
      %v1235 = vadd.f32 %v1196, 1e-05
      %v1236 = vadd.f32 %v1197, 1e-05
      %v1237 = vadd.f32 %v1198, 1e-05
      %v1238 = vadd.f32 %v1199, 1e-05
      %v1239 = vadd.f32 %v1200, 1e-05
      %v1240 = vadd.f32 %v1201, 1e-05
      %v1241 = vadd.f32 %v1202, 1e-05
      %v1242 = vadd.f32 %v1203, 1e-05
      %v1243 = vadd.f32 %v1204, 1e-05
      %v1244 = vadd.f32 %v1205, 1e-05
      %v1245 = vadd.f32 %v1206, 1e-05
      %v1246 = vadd.f32 %v1207, 1e-05
      %v1247 = vadd.f32 %v1208, 1e-05
      %v1248 = vadd.f32 %v1209, 1e-05
      %v1249 = vadd.f32 %v1210, 1e-05
      %v1250 = vadd.f32 %v1211, 1e-05
      %v1251 = vadd.f32 %v1212, 1e-05
      %v1252 = vadd.f32 %v1213, 1e-05
      %v1253 = vadd.f32 %v1214, 1e-05
      %v1254 = vadd.f32 %v1215, 1e-05
      %v1255 = vadd.f32 %v1216, 1e-05
      %v1256 = vadd.f32 %v1217, 1e-05
      %v1257 = vadd.f32 %v1218, 1e-05
      %v1258 = vadd.f32 %v1219, 1e-05
      %v1259 = vadd.f32 %v1220, 1e-05
      %v1260 = vadd.f32 %v1221, 1e-05
      %v1261 = vadd.f32 %v1222, 1e-05
      %v1262 = vadd.f32 %v1223, 1e-05
      %v1263 = vadd.f32 %v1224, 1e-05
      %v1264 = vadd.f32 %v1225, 1e-05
      %v1265 = vadd.f32 %v1226, 1e-05
      %v1266 = vadd.f32 %v1227, 1e-05
      %v1267 = vadd.f32 %v1228, 1e-05
      %v1268 = vadd.f32 %v1229, 1e-05
      %v1269 = vadd.f32 %v1230, 1e-05
      %v1270 = vadd.f32 %v1231, 1e-05
      %v1271 = vadd.f32 %v1232, 1e-05
      %v1272 = vadd.f32 %v1233, 1e-05
      %v1273 = vadd.f32 %v1234, 1e-05
      %v1274 = vrsqrt.pop %v1235
      %v1275 = vmul.f32 %v1274, %v1235
      %v1276 = vmul.f32 %v1275, %v1274
      %v1277 = vmul.f32 0.5, %v1276
      %v1278 = vsub.f32 1.5, %v1277
      %v1279 = vmul.f32 %v1274, %v1278
      %vm1280 = vweird.f32 %v1235
      %vm1281 = vweird.f32 %v1274
      %vm1282 = vmor %vm1280, %vm1281
      %v1283 = vsel %vm1282, %v1274, %v1279
      %v1284 = vrsqrt.pop %v1236
      %v1285 = vmul.f32 %v1284, %v1236
      %v1286 = vmul.f32 %v1285, %v1284
      %v1287 = vmul.f32 0.5, %v1286
      %v1288 = vsub.f32 1.5, %v1287
      %v1289 = vmul.f32 %v1284, %v1288
      %vm1290 = vweird.f32 %v1236
      %vm1291 = vweird.f32 %v1284
      %vm1292 = vmor %vm1290, %vm1291
      %v1293 = vsel %vm1292, %v1284, %v1289
      %v1294 = vrsqrt.pop %v1237
      %v1295 = vmul.f32 %v1294, %v1237
      %v1296 = vmul.f32 %v1295, %v1294
      %v1297 = vmul.f32 0.5, %v1296
      %v1298 = vsub.f32 1.5, %v1297
      %v1299 = vmul.f32 %v1294, %v1298
      %vm1300 = vweird.f32 %v1237
      %vm1301 = vweird.f32 %v1294
      %vm1302 = vmor %vm1300, %vm1301
      %v1303 = vsel %vm1302, %v1294, %v1299
      %v1304 = vrsqrt.pop %v1238
      %v1305 = vmul.f32 %v1304, %v1238
      %v1306 = vmul.f32 %v1305, %v1304
      %v1307 = vmul.f32 0.5, %v1306
      %v1308 = vsub.f32 1.5, %v1307
      %v1309 = vmul.f32 %v1304, %v1308
      %vm1310 = vweird.f32 %v1238
      %vm1311 = vweird.f32 %v1304
      %vm1312 = vmor %vm1310, %vm1311
      %v1313 = vsel %vm1312, %v1304, %v1309
      %v1314 = vrsqrt.pop %v1239
      %v1315 = vmul.f32 %v1314, %v1239
      %v1316 = vmul.f32 %v1315, %v1314
      %v1317 = vmul.f32 0.5, %v1316
      %v1318 = vsub.f32 1.5, %v1317
      %v1319 = vmul.f32 %v1314, %v1318
      %vm1320 = vweird.f32 %v1239
      %vm1321 = vweird.f32 %v1314
      %vm1322 = vmor %vm1320, %vm1321
      %v1323 = vsel %vm1322, %v1314, %v1319
      %v1324 = vrsqrt.pop %v1240
      %v1325 = vmul.f32 %v1324, %v1240
      %v1326 = vmul.f32 %v1325, %v1324
      %v1327 = vmul.f32 0.5, %v1326
      %v1328 = vsub.f32 1.5, %v1327
      %v1329 = vmul.f32 %v1324, %v1328
      %vm1330 = vweird.f32 %v1240
      %vm1331 = vweird.f32 %v1324
      %vm1332 = vmor %vm1330, %vm1331
      %v1333 = vsel %vm1332, %v1324, %v1329
      %v1334 = vrsqrt.pop %v1241
      %v1335 = vmul.f32 %v1334, %v1241
      %v1336 = vmul.f32 %v1335, %v1334
      %v1337 = vmul.f32 0.5, %v1336
      %v1338 = vsub.f32 1.5, %v1337
      %v1339 = vmul.f32 %v1334, %v1338
      %vm1340 = vweird.f32 %v1241
      %vm1341 = vweird.f32 %v1334
      %vm1342 = vmor %vm1340, %vm1341
      %v1343 = vsel %vm1342, %v1334, %v1339
      %v1344 = vrsqrt.pop %v1242
      %v1345 = vmul.f32 %v1344, %v1242
      %v1346 = vmul.f32 %v1345, %v1344
      %v1347 = vmul.f32 0.5, %v1346
      %v1348 = vsub.f32 1.5, %v1347
      %v1349 = vmul.f32 %v1344, %v1348
      %vm1350 = vweird.f32 %v1242
      %vm1351 = vweird.f32 %v1344
      %vm1352 = vmor %vm1350, %vm1351
      %v1353 = vsel %vm1352, %v1344, %v1349
      %v1354 = vrsqrt.pop %v1243
      %v1355 = vmul.f32 %v1354, %v1243
      %v1356 = vmul.f32 %v1355, %v1354
      %v1357 = vmul.f32 0.5, %v1356
      %v1358 = vsub.f32 1.5, %v1357
      %v1359 = vmul.f32 %v1354, %v1358
      %vm1360 = vweird.f32 %v1243
      %vm1361 = vweird.f32 %v1354
      %vm1362 = vmor %vm1360, %vm1361
      %v1363 = vsel %vm1362, %v1354, %v1359
      %v1364 = vrsqrt.pop %v1244
      %v1365 = vmul.f32 %v1364, %v1244
      %v1366 = vmul.f32 %v1365, %v1364
      %v1367 = vmul.f32 0.5, %v1366
      %v1368 = vsub.f32 1.5, %v1367
      %v1369 = vmul.f32 %v1364, %v1368
      %vm1370 = vweird.f32 %v1244
      %vm1371 = vweird.f32 %v1364
      %vm1372 = vmor %vm1370, %vm1371
      %v1373 = vsel %vm1372, %v1364, %v1369
      %v1374 = vrsqrt.pop %v1245
      %v1375 = vmul.f32 %v1374, %v1245
      %v1376 = vmul.f32 %v1375, %v1374
      %v1377 = vmul.f32 0.5, %v1376
      %v1378 = vsub.f32 1.5, %v1377
      %v1379 = vmul.f32 %v1374, %v1378
      %vm1380 = vweird.f32 %v1245
      %vm1381 = vweird.f32 %v1374
      %vm1382 = vmor %vm1380, %vm1381
      %v1383 = vsel %vm1382, %v1374, %v1379
      %v1384 = vrsqrt.pop %v1246
      %v1385 = vmul.f32 %v1384, %v1246
      %v1386 = vmul.f32 %v1385, %v1384
      %v1387 = vmul.f32 0.5, %v1386
      %v1388 = vsub.f32 1.5, %v1387
      %v1389 = vmul.f32 %v1384, %v1388
      %vm1390 = vweird.f32 %v1246
      %vm1391 = vweird.f32 %v1384
      %vm1392 = vmor %vm1390, %vm1391
      %v1393 = vsel %vm1392, %v1384, %v1389
      %v1394 = vrsqrt.pop %v1247
      %v1395 = vmul.f32 %v1394, %v1247
      %v1396 = vmul.f32 %v1395, %v1394
      %v1397 = vmul.f32 0.5, %v1396
      %v1398 = vsub.f32 1.5, %v1397
      %v1399 = vmul.f32 %v1394, %v1398
      %vm1400 = vweird.f32 %v1247
      %vm1401 = vweird.f32 %v1394
      %vm1402 = vmor %vm1400, %vm1401
      %v1403 = vsel %vm1402, %v1394, %v1399
      %v1404 = vrsqrt.pop %v1248
      %v1405 = vmul.f32 %v1404, %v1248
      %v1406 = vmul.f32 %v1405, %v1404
      %v1407 = vmul.f32 0.5, %v1406
      %v1408 = vsub.f32 1.5, %v1407
      %v1409 = vmul.f32 %v1404, %v1408
      %vm1410 = vweird.f32 %v1248
      %vm1411 = vweird.f32 %v1404
      %vm1412 = vmor %vm1410, %vm1411
      %v1413 = vsel %vm1412, %v1404, %v1409
      %v1414 = vrsqrt.pop %v1249
      %v1415 = vmul.f32 %v1414, %v1249
      %v1416 = vmul.f32 %v1415, %v1414
      %v1417 = vmul.f32 0.5, %v1416
      %v1418 = vsub.f32 1.5, %v1417
      %v1419 = vmul.f32 %v1414, %v1418
      %vm1420 = vweird.f32 %v1249
      %vm1421 = vweird.f32 %v1414
      %vm1422 = vmor %vm1420, %vm1421
      %v1423 = vsel %vm1422, %v1414, %v1419
      %v1424 = vrsqrt.pop %v1250
      %v1425 = vmul.f32 %v1424, %v1250
      %v1426 = vmul.f32 %v1425, %v1424
      %v1427 = vmul.f32 0.5, %v1426
      %v1428 = vsub.f32 1.5, %v1427
      %v1429 = vmul.f32 %v1424, %v1428
      %vm1430 = vweird.f32 %v1250
      %vm1431 = vweird.f32 %v1424
      %vm1432 = vmor %vm1430, %vm1431
      %v1433 = vsel %vm1432, %v1424, %v1429
      %v1434 = vrsqrt.pop %v1251
      %v1435 = vmul.f32 %v1434, %v1251
      %v1436 = vmul.f32 %v1435, %v1434
      %v1437 = vmul.f32 0.5, %v1436
      %v1438 = vsub.f32 1.5, %v1437
      %v1439 = vmul.f32 %v1434, %v1438
      %vm1440 = vweird.f32 %v1251
      %vm1441 = vweird.f32 %v1434
      %vm1442 = vmor %vm1440, %vm1441
      %v1443 = vsel %vm1442, %v1434, %v1439
      %v1444 = vrsqrt.pop %v1252
      %v1445 = vmul.f32 %v1444, %v1252
      %v1446 = vmul.f32 %v1445, %v1444
      %v1447 = vmul.f32 0.5, %v1446
      %v1448 = vsub.f32 1.5, %v1447
      %v1449 = vmul.f32 %v1444, %v1448
      %vm1450 = vweird.f32 %v1252
      %vm1451 = vweird.f32 %v1444
      %vm1452 = vmor %vm1450, %vm1451
      %v1453 = vsel %vm1452, %v1444, %v1449
      %v1454 = vrsqrt.pop %v1253
      %v1455 = vmul.f32 %v1454, %v1253
      %v1456 = vmul.f32 %v1455, %v1454
      %v1457 = vmul.f32 0.5, %v1456
      %v1458 = vsub.f32 1.5, %v1457
      %v1459 = vmul.f32 %v1454, %v1458
      %vm1460 = vweird.f32 %v1253
      %vm1461 = vweird.f32 %v1454
      %vm1462 = vmor %vm1460, %vm1461
      %v1463 = vsel %vm1462, %v1454, %v1459
      %v1464 = vrsqrt.pop %v1254
      %v1465 = vmul.f32 %v1464, %v1254
      %v1466 = vmul.f32 %v1465, %v1464
      %v1467 = vmul.f32 0.5, %v1466
      %v1468 = vsub.f32 1.5, %v1467
      %v1469 = vmul.f32 %v1464, %v1468
      %vm1470 = vweird.f32 %v1254
      %vm1471 = vweird.f32 %v1464
      %vm1472 = vmor %vm1470, %vm1471
      %v1473 = vsel %vm1472, %v1464, %v1469
      %v1474 = vrsqrt.pop %v1255
      %v1475 = vmul.f32 %v1474, %v1255
      %v1476 = vmul.f32 %v1475, %v1474
      %v1477 = vmul.f32 0.5, %v1476
      %v1478 = vsub.f32 1.5, %v1477
      %v1479 = vmul.f32 %v1474, %v1478
      %vm1480 = vweird.f32 %v1255
      %vm1481 = vweird.f32 %v1474
      %vm1482 = vmor %vm1480, %vm1481
      %v1483 = vsel %vm1482, %v1474, %v1479
      %v1484 = vrsqrt.pop %v1256
      %v1485 = vmul.f32 %v1484, %v1256
      %v1486 = vmul.f32 %v1485, %v1484
      %v1487 = vmul.f32 0.5, %v1486
      %v1488 = vsub.f32 1.5, %v1487
      %v1489 = vmul.f32 %v1484, %v1488
      %vm1490 = vweird.f32 %v1256
      %vm1491 = vweird.f32 %v1484
      %vm1492 = vmor %vm1490, %vm1491
      %v1493 = vsel %vm1492, %v1484, %v1489
      %v1494 = vrsqrt.pop %v1257
      %v1495 = vmul.f32 %v1494, %v1257
      %v1496 = vmul.f32 %v1495, %v1494
      %v1497 = vmul.f32 0.5, %v1496
      %v1498 = vsub.f32 1.5, %v1497
      %v1499 = vmul.f32 %v1494, %v1498
      %vm1500 = vweird.f32 %v1257
      %vm1501 = vweird.f32 %v1494
      %vm1502 = vmor %vm1500, %vm1501
      %v1503 = vsel %vm1502, %v1494, %v1499
      %v1504 = vrsqrt.pop %v1258
      %v1505 = vmul.f32 %v1504, %v1258
      %v1506 = vmul.f32 %v1505, %v1504
      %v1507 = vmul.f32 0.5, %v1506
      %v1508 = vsub.f32 1.5, %v1507
      %v1509 = vmul.f32 %v1504, %v1508
      %vm1510 = vweird.f32 %v1258
      %vm1511 = vweird.f32 %v1504
      %vm1512 = vmor %vm1510, %vm1511
      %v1513 = vsel %vm1512, %v1504, %v1509
      %v1514 = vrsqrt.pop %v1259
      %v1515 = vmul.f32 %v1514, %v1259
      %v1516 = vmul.f32 %v1515, %v1514
      %v1517 = vmul.f32 0.5, %v1516
      %v1518 = vsub.f32 1.5, %v1517
      %v1519 = vmul.f32 %v1514, %v1518
      %vm1520 = vweird.f32 %v1259
      %vm1521 = vweird.f32 %v1514
      %vm1522 = vmor %vm1520, %vm1521
      %v1523 = vsel %vm1522, %v1514, %v1519
      %v1524 = vrsqrt.pop %v1260
      %v1525 = vmul.f32 %v1524, %v1260
      %v1526 = vmul.f32 %v1525, %v1524
      %v1527 = vmul.f32 0.5, %v1526
      %v1528 = vsub.f32 1.5, %v1527
      %v1529 = vmul.f32 %v1524, %v1528
      %vm1530 = vweird.f32 %v1260
      %vm1531 = vweird.f32 %v1524
      %vm1532 = vmor %vm1530, %vm1531
      %v1533 = vsel %vm1532, %v1524, %v1529
      %v1534 = vrsqrt.pop %v1261
      %v1535 = vmul.f32 %v1534, %v1261
      %v1536 = vmul.f32 %v1535, %v1534
      %v1537 = vmul.f32 0.5, %v1536
      %v1538 = vsub.f32 1.5, %v1537
      %v1539 = vmul.f32 %v1534, %v1538
      %vm1540 = vweird.f32 %v1261
      %vm1541 = vweird.f32 %v1534
      %vm1542 = vmor %vm1540, %vm1541
      %v1543 = vsel %vm1542, %v1534, %v1539
      %v1544 = vrsqrt.pop %v1262
      %v1545 = vmul.f32 %v1544, %v1262
      %v1546 = vmul.f32 %v1545, %v1544
      %v1547 = vmul.f32 0.5, %v1546
      %v1548 = vsub.f32 1.5, %v1547
      %v1549 = vmul.f32 %v1544, %v1548
      %vm1550 = vweird.f32 %v1262
      %vm1551 = vweird.f32 %v1544
      %vm1552 = vmor %vm1550, %vm1551
      %v1553 = vsel %vm1552, %v1544, %v1549
      %v1554 = vrsqrt.pop %v1263
      %v1555 = vmul.f32 %v1554, %v1263
      %v1556 = vmul.f32 %v1555, %v1554
      %v1557 = vmul.f32 0.5, %v1556
      %v1558 = vsub.f32 1.5, %v1557
      %v1559 = vmul.f32 %v1554, %v1558
      %vm1560 = vweird.f32 %v1263
      %vm1561 = vweird.f32 %v1554
      %vm1562 = vmor %vm1560, %vm1561
      %v1563 = vsel %vm1562, %v1554, %v1559
      %v1564 = vrsqrt.pop %v1264
      %v1565 = vmul.f32 %v1564, %v1264
      %v1566 = vmul.f32 %v1565, %v1564
      %v1567 = vmul.f32 0.5, %v1566
      %v1568 = vsub.f32 1.5, %v1567
      %v1569 = vmul.f32 %v1564, %v1568
      %vm1570 = vweird.f32 %v1264
      %vm1571 = vweird.f32 %v1564
      %vm1572 = vmor %vm1570, %vm1571
      %v1573 = vsel %vm1572, %v1564, %v1569
      %v1574 = vrsqrt.pop %v1265
      %v1575 = vmul.f32 %v1574, %v1265
      %v1576 = vmul.f32 %v1575, %v1574
      %v1577 = vmul.f32 0.5, %v1576
      %v1578 = vsub.f32 1.5, %v1577
      %v1579 = vmul.f32 %v1574, %v1578
      %vm1580 = vweird.f32 %v1265
      %vm1581 = vweird.f32 %v1574
      %vm1582 = vmor %vm1580, %vm1581
      %v1583 = vsel %vm1582, %v1574, %v1579
      %v1584 = vrsqrt.pop %v1266
      %v1585 = vmul.f32 %v1584, %v1266
      %v1586 = vmul.f32 %v1585, %v1584
      %v1587 = vmul.f32 0.5, %v1586
      %v1588 = vsub.f32 1.5, %v1587
      %v1589 = vmul.f32 %v1584, %v1588
      %vm1590 = vweird.f32 %v1266
      %vm1591 = vweird.f32 %v1584
      %vm1592 = vmor %vm1590, %vm1591
      %v1593 = vsel %vm1592, %v1584, %v1589
      %v1594 = vrsqrt.pop %v1267
      %v1595 = vmul.f32 %v1594, %v1267
      %v1596 = vmul.f32 %v1595, %v1594
      %v1597 = vmul.f32 0.5, %v1596
      %v1598 = vsub.f32 1.5, %v1597
      %v1599 = vmul.f32 %v1594, %v1598
      %vm1600 = vweird.f32 %v1267
      %vm1601 = vweird.f32 %v1594
      %vm1602 = vmor %vm1600, %vm1601
      %v1603 = vsel %vm1602, %v1594, %v1599
      %v1604 = vrsqrt.pop %v1268
      %v1605 = vmul.f32 %v1604, %v1268
      %v1606 = vmul.f32 %v1605, %v1604
      %v1607 = vmul.f32 0.5, %v1606
      %v1608 = vsub.f32 1.5, %v1607
      %v1609 = vmul.f32 %v1604, %v1608
      %vm1610 = vweird.f32 %v1268
      %vm1611 = vweird.f32 %v1604
      %vm1612 = vmor %vm1610, %vm1611
      %v1613 = vsel %vm1612, %v1604, %v1609
      %v1614 = vrsqrt.pop %v1269
      %v1615 = vmul.f32 %v1614, %v1269
      %v1616 = vmul.f32 %v1615, %v1614
      %v1617 = vmul.f32 0.5, %v1616
      %v1618 = vsub.f32 1.5, %v1617
      %v1619 = vmul.f32 %v1614, %v1618
      %vm1620 = vweird.f32 %v1269
      %vm1621 = vweird.f32 %v1614
      %vm1622 = vmor %vm1620, %vm1621
      %v1623 = vsel %vm1622, %v1614, %v1619
      %v1624 = vrsqrt.pop %v1270
      %v1625 = vmul.f32 %v1624, %v1270
      %v1626 = vmul.f32 %v1625, %v1624
      %v1627 = vmul.f32 0.5, %v1626
      %v1628 = vsub.f32 1.5, %v1627
      %v1629 = vmul.f32 %v1624, %v1628
      %vm1630 = vweird.f32 %v1270
      %vm1631 = vweird.f32 %v1624
      %vm1632 = vmor %vm1630, %vm1631
      %v1633 = vsel %vm1632, %v1624, %v1629
      %v1634 = vrsqrt.pop %v1271
      %v1635 = vmul.f32 %v1634, %v1271
      %v1636 = vmul.f32 %v1635, %v1634
      %v1637 = vmul.f32 0.5, %v1636
      %v1638 = vsub.f32 1.5, %v1637
      %v1639 = vmul.f32 %v1634, %v1638
      %vm1640 = vweird.f32 %v1271
      %vm1641 = vweird.f32 %v1634
      %vm1642 = vmor %vm1640, %vm1641
      %v1643 = vsel %vm1642, %v1634, %v1639
      %v1644 = vrsqrt.pop %v1272
      %v1645 = vmul.f32 %v1644, %v1272
      %v1646 = vmul.f32 %v1645, %v1644
      %v1647 = vmul.f32 0.5, %v1646
      %v1648 = vsub.f32 1.5, %v1647
      %v1649 = vmul.f32 %v1644, %v1648
      %vm1650 = vweird.f32 %v1272
      %vm1651 = vweird.f32 %v1644
      %vm1652 = vmor %vm1650, %vm1651
      %v1653 = vsel %vm1652, %v1644, %v1649
      %v1654 = vrsqrt.pop %v1273
      %v1655 = vmul.f32 %v1654, %v1273
      %v1656 = vmul.f32 %v1655, %v1654
      %v1657 = vmul.f32 0.5, %v1656
      %v1658 = vsub.f32 1.5, %v1657
      %v1659 = vmul.f32 %v1654, %v1658
      %vm1660 = vweird.f32 %v1273
      %vm1661 = vweird.f32 %v1654
      %vm1662 = vmor %vm1660, %vm1661
      %v1663 = vsel %vm1662, %v1654, %v1659
      %v1664 = vmul.f32 %v263, %v1283
      %v1665 = vmul.f32 %v264, %v1293
      %v1666 = vmul.f32 %v265, %v1303
      %v1667 = vmul.f32 %v266, %v1313
      %v1668 = vmul.f32 %v267, %v1323
      %v1669 = vmul.f32 %v268, %v1333
      %v1670 = vmul.f32 %v269, %v1343
      %v1671 = vmul.f32 %v270, %v1353
      %v1672 = vmul.f32 %v271, %v1363
      %v1673 = vmul.f32 %v272, %v1373
      %v1674 = vmul.f32 %v273, %v1383
      %v1675 = vmul.f32 %v274, %v1393
      %v1676 = vmul.f32 %v275, %v1403
      %v1677 = vmul.f32 %v276, %v1413
      %v1678 = vmul.f32 %v277, %v1423
      %v1679 = vmul.f32 %v278, %v1433
      %v1680 = vmul.f32 %v279, %v1443
      %v1681 = vmul.f32 %v280, %v1453
      %v1682 = vmul.f32 %v281, %v1463
      %v1683 = vmul.f32 %v282, %v1473
      %v1684 = vmul.f32 %v283, %v1483
      %v1685 = vmul.f32 %v284, %v1493
      %v1686 = vmul.f32 %v285, %v1503
      %v1687 = vmul.f32 %v286, %v1513
      %v1688 = vmul.f32 %v287, %v1523
      %v1689 = vmul.f32 %v288, %v1533
      %v1690 = vmul.f32 %v289, %v1543
      %v1691 = vmul.f32 %v290, %v1553
      %v1692 = vmul.f32 %v291, %v1563
      %v1693 = vmul.f32 %v292, %v1573
      %v1694 = vmul.f32 %v293, %v1583
      %v1695 = vmul.f32 %v294, %v1593
      %v1696 = vmul.f32 %v295, %v1603
      %v1697 = vmul.f32 %v296, %v1613
      %v1698 = vmul.f32 %v297, %v1623
      %v1699 = vmul.f32 %v298, %v1633
      %v1700 = vmul.f32 %v299, %v1643
      %v1701 = vmul.f32 %v300, %v1653
      %v1702 = vmul.f32 %v301, %v1663
      %1704 = vset.pattern.permute.xlu0 0
      %1705 = vperm.xlu0 %1704, %v1664
      %v1706 = vpop.permute.xlu0 %1705
      %1709 = vset.pattern.permute.xlu0 0
      %1710 = vperm.xlu0 %1709, %v1665
      %v1711 = vpop.permute.xlu0 %1710
      %1714 = vset.pattern.permute.xlu0 0
      %1715 = vperm.xlu0 %1714, %v1666
      %v1716 = vpop.permute.xlu0 %1715
      %1719 = vset.pattern.permute.xlu0 0
      %1720 = vperm.xlu0 %1719, %v1667
      %v1721 = vpop.permute.xlu0 %1720
      %1724 = vset.pattern.permute.xlu0 0
      %1725 = vperm.xlu0 %1724, %v1668
      %v1726 = vpop.permute.xlu0 %1725
      %1729 = vset.pattern.permute.xlu0 0
      %1730 = vperm.xlu0 %1729, %v1669
      %v1731 = vpop.permute.xlu0 %1730
      %1734 = vset.pattern.permute.xlu0 0
      %1735 = vperm.xlu0 %1734, %v1670
      %v1736 = vpop.permute.xlu0 %1735
      %1739 = vset.pattern.permute.xlu0 0
      %1740 = vperm.xlu0 %1739, %v1671
      %v1741 = vpop.permute.xlu0 %1740
      %1744 = vset.pattern.permute.xlu0 0
      %1745 = vperm.xlu0 %1744, %v1672
      %v1746 = vpop.permute.xlu0 %1745
      %1749 = vset.pattern.permute.xlu0 0
      %1750 = vperm.xlu0 %1749, %v1673
      %v1751 = vpop.permute.xlu0 %1750
      %1754 = vset.pattern.permute.xlu0 0
      %1755 = vperm.xlu0 %1754, %v1674
      %v1756 = vpop.permute.xlu0 %1755
      %1759 = vset.pattern.permute.xlu0 0
      %1760 = vperm.xlu0 %1759, %v1675
      %v1761 = vpop.permute.xlu0 %1760
      %1764 = vset.pattern.permute.xlu0 0
      %1765 = vperm.xlu0 %1764, %v1676
      %v1766 = vpop.permute.xlu0 %1765
      %1769 = vset.pattern.permute.xlu0 0
      %1770 = vperm.xlu0 %1769, %v1677
      %v1771 = vpop.permute.xlu0 %1770
      %1774 = vset.pattern.permute.xlu0 0
      %1775 = vperm.xlu0 %1774, %v1678
      %v1776 = vpop.permute.xlu0 %1775
      %1779 = vset.pattern.permute.xlu0 0
      %1780 = vperm.xlu0 %1779, %v1679
      %v1781 = vpop.permute.xlu0 %1780
      %1784 = vset.pattern.permute.xlu0 0
      %1785 = vperm.xlu0 %1784, %v1680
      %v1786 = vpop.permute.xlu0 %1785
      %1789 = vset.pattern.permute.xlu0 0
      %1790 = vperm.xlu0 %1789, %v1681
      %v1791 = vpop.permute.xlu0 %1790
      %1794 = vset.pattern.permute.xlu0 0
      %1795 = vperm.xlu0 %1794, %v1682
      %v1796 = vpop.permute.xlu0 %1795
      %1799 = vset.pattern.permute.xlu0 0
      %1800 = vperm.xlu0 %1799, %v1683
      %v1801 = vpop.permute.xlu0 %1800
      %1804 = vset.pattern.permute.xlu0 0
      %1805 = vperm.xlu0 %1804, %v1684
      %v1806 = vpop.permute.xlu0 %1805
      %1809 = vset.pattern.permute.xlu0 0
      %1810 = vperm.xlu0 %1809, %v1685
      %v1811 = vpop.permute.xlu0 %1810
      %1814 = vset.pattern.permute.xlu0 0
      %1815 = vperm.xlu0 %1814, %v1686
      %v1816 = vpop.permute.xlu0 %1815
      %1819 = vset.pattern.permute.xlu0 0
      %1820 = vperm.xlu0 %1819, %v1687
      %v1821 = vpop.permute.xlu0 %1820
      %1824 = vset.pattern.permute.xlu0 0
      %1825 = vperm.xlu0 %1824, %v1688
      %v1826 = vpop.permute.xlu0 %1825
      %1829 = vset.pattern.permute.xlu0 0
      %1830 = vperm.xlu0 %1829, %v1689
      %v1831 = vpop.permute.xlu0 %1830
      %1834 = vset.pattern.permute.xlu0 0
      %1835 = vperm.xlu0 %1834, %v1690
      %v1836 = vpop.permute.xlu0 %1835
      %1839 = vset.pattern.permute.xlu0 0
      %1840 = vperm.xlu0 %1839, %v1691
      %v1841 = vpop.permute.xlu0 %1840
      %1844 = vset.pattern.permute.xlu0 0
      %1845 = vperm.xlu0 %1844, %v1692
      %v1846 = vpop.permute.xlu0 %1845
      %1849 = vset.pattern.permute.xlu0 0
      %1850 = vperm.xlu0 %1849, %v1693
      %v1851 = vpop.permute.xlu0 %1850
      %1854 = vset.pattern.permute.xlu0 0
      %1855 = vperm.xlu0 %1854, %v1694
      %v1856 = vpop.permute.xlu0 %1855
      %1859 = vset.pattern.permute.xlu0 0
      %1860 = vperm.xlu0 %1859, %v1695
      %v1861 = vpop.permute.xlu0 %1860
      %1864 = vset.pattern.permute.xlu0 0
      %1865 = vperm.xlu0 %1864, %v1696
      %v1866 = vpop.permute.xlu0 %1865
      %1869 = vset.pattern.permute.xlu0 0
      %1870 = vperm.xlu0 %1869, %v1697
      %v1871 = vpop.permute.xlu0 %1870
      %1874 = vset.pattern.permute.xlu0 0
      %1875 = vperm.xlu0 %1874, %v1698
      %v1876 = vpop.permute.xlu0 %1875
      %1879 = vset.pattern.permute.xlu0 0
      %1880 = vperm.xlu0 %1879, %v1699
      %v1881 = vpop.permute.xlu0 %1880
      %1884 = vset.pattern.permute.xlu0 0
      %1885 = vperm.xlu0 %1884, %v1700
      %v1886 = vpop.permute.xlu0 %1885
      %1889 = vset.pattern.permute.xlu0 0
      %1890 = vperm.xlu0 %1889, %v1701
      %v1891 = vpop.permute.xlu0 %1890
      %1894 = vset.pattern.permute.xlu0 0
      %1895 = vperm.xlu0 %1894, %v1702
      %v1896 = vpop.permute.xlu0 %1895
      %v1898 = vmul.f32 %v884, %v1706
      %v1899 = vmul.f32 %v885, %v1706
      %v1900 = vmul.f32 %v886, %v1711
      %v1901 = vmul.f32 %v887, %v1711
      %v1902 = vmul.f32 %v888, %v1716
      %v1903 = vmul.f32 %v889, %v1716
      %v1904 = vmul.f32 %v890, %v1721
      %v1905 = vmul.f32 %v891, %v1721
      %v1906 = vmul.f32 %v892, %v1726
      %v1907 = vmul.f32 %v893, %v1726
      %v1908 = vmul.f32 %v894, %v1731
      %v1909 = vmul.f32 %v895, %v1731
      %v1910 = vmul.f32 %v896, %v1736
      %v1911 = vmul.f32 %v897, %v1736
      %v1912 = vmul.f32 %v898, %v1741
      %v1913 = vmul.f32 %v899, %v1741
      %v1914 = vmul.f32 %v900, %v1746
      %v1915 = vmul.f32 %v901, %v1746
      %v1916 = vmul.f32 %v902, %v1751
      %v1917 = vmul.f32 %v903, %v1751
      %v1918 = vmul.f32 %v904, %v1756
      %v1919 = vmul.f32 %v905, %v1756
      %v1920 = vmul.f32 %v906, %v1761
      %v1921 = vmul.f32 %v907, %v1761
      %v1922 = vmul.f32 %v908, %v1766
      %v1923 = vmul.f32 %v909, %v1766
      %v1924 = vmul.f32 %v910, %v1771
      %v1925 = vmul.f32 %v911, %v1771
      %v1926 = vmul.f32 %v912, %v1776
      %v1927 = vmul.f32 %v913, %v1776
      %v1928 = vmul.f32 %v914, %v1781
      %v1929 = vmul.f32 %v915, %v1781
      %v1930 = vmul.f32 %v916, %v1786
      %v1931 = vmul.f32 %v917, %v1786
      %v1932 = vmul.f32 %v918, %v1791
      %v1933 = vmul.f32 %v919, %v1791
      %v1934 = vmul.f32 %v920, %v1796
      %v1935 = vmul.f32 %v921, %v1796
      %v1936 = vmul.f32 %v922, %v1801
      %v1937 = vmul.f32 %v923, %v1801
      %v1938 = vmul.f32 %v924, %v1806
      %v1939 = vmul.f32 %v925, %v1806
      %v1940 = vmul.f32 %v926, %v1811
      %v1941 = vmul.f32 %v927, %v1811
      %v1942 = vmul.f32 %v928, %v1816
      %v1943 = vmul.f32 %v929, %v1816
      %v1944 = vmul.f32 %v930, %v1821
      %v1945 = vmul.f32 %v931, %v1821
      %v1946 = vmul.f32 %v932, %v1826
      %v1947 = vmul.f32 %v933, %v1826
      %v1948 = vmul.f32 %v934, %v1831
      %v1949 = vmul.f32 %v935, %v1831
      %v1950 = vmul.f32 %v936, %v1836
      %v1951 = vmul.f32 %v937, %v1836
      %v1952 = vmul.f32 %v938, %v1841
      %v1953 = vmul.f32 %v939, %v1841
      %v1954 = vmul.f32 %v940, %v1846
      %v1955 = vmul.f32 %v941, %v1846
      %v1956 = vmul.f32 %v942, %v1851
      %v1957 = vmul.f32 %v943, %v1851
      %v1958 = vmul.f32 %v944, %v1856
      %v1959 = vmul.f32 %v945, %v1856
      %v1960 = vmul.f32 %v946, %v1861
      %v1961 = vmul.f32 %v947, %v1861
      %v1962 = vmul.f32 %v948, %v1866
      %v1963 = vmul.f32 %v949, %v1866
      %v1964 = vmul.f32 %v950, %v1871
      %v1965 = vmul.f32 %v951, %v1871
      %v1966 = vmul.f32 %v952, %v1876
      %v1967 = vmul.f32 %v953, %v1876
      %v1968 = vmul.f32 %v954, %v1881
      %v1969 = vmul.f32 %v955, %v1881
      %v1970 = vmul.f32 %v956, %v1886
      %v1971 = vmul.f32 %v957, %v1886
      %v1972 = vmul.f32 %v958, %v1891
      %v1973 = vmul.f32 %v959, %v1891
      %v1974 = vmul.f32 %v960, %v1896
      %v1975 = vmul.f32 %v961, %v1896
      %1977 = vset.pattern.permute.xlu0 1
      %1978 = vperm.xlu0 %1977, %v263
      %v1979 = vpop.permute.xlu0 %1978
      %1982 = vset.pattern.permute.xlu0 1
      %1983 = vperm.xlu0 %1982, %v264
      %v1984 = vpop.permute.xlu0 %1983
      %1987 = vset.pattern.permute.xlu0 1
      %1988 = vperm.xlu0 %1987, %v265
      %v1989 = vpop.permute.xlu0 %1988
      %1992 = vset.pattern.permute.xlu0 1
      %1993 = vperm.xlu0 %1992, %v266
      %v1994 = vpop.permute.xlu0 %1993
      %1997 = vset.pattern.permute.xlu0 1
      %1998 = vperm.xlu0 %1997, %v267
      %v1999 = vpop.permute.xlu0 %1998
      %2002 = vset.pattern.permute.xlu0 1
      %2003 = vperm.xlu0 %2002, %v268
      %v2004 = vpop.permute.xlu0 %2003
      %2007 = vset.pattern.permute.xlu0 1
      %2008 = vperm.xlu0 %2007, %v269
      %v2009 = vpop.permute.xlu0 %2008
      %2012 = vset.pattern.permute.xlu0 1
      %2013 = vperm.xlu0 %2012, %v270
      %v2014 = vpop.permute.xlu0 %2013
      %2017 = vset.pattern.permute.xlu0 1
      %2018 = vperm.xlu0 %2017, %v271
      %v2019 = vpop.permute.xlu0 %2018
      %2022 = vset.pattern.permute.xlu0 1
      %2023 = vperm.xlu0 %2022, %v272
      %v2024 = vpop.permute.xlu0 %2023
      %2027 = vset.pattern.permute.xlu0 1
      %2028 = vperm.xlu0 %2027, %v273
      %v2029 = vpop.permute.xlu0 %2028
      %2032 = vset.pattern.permute.xlu0 1
      %2033 = vperm.xlu0 %2032, %v274
      %v2034 = vpop.permute.xlu0 %2033
      %2037 = vset.pattern.permute.xlu0 1
      %2038 = vperm.xlu0 %2037, %v275
      %v2039 = vpop.permute.xlu0 %2038
      %2042 = vset.pattern.permute.xlu0 1
      %2043 = vperm.xlu0 %2042, %v276
      %v2044 = vpop.permute.xlu0 %2043
      %2047 = vset.pattern.permute.xlu0 1
      %2048 = vperm.xlu0 %2047, %v277
      %v2049 = vpop.permute.xlu0 %2048
      %2052 = vset.pattern.permute.xlu0 1
      %2053 = vperm.xlu0 %2052, %v278
      %v2054 = vpop.permute.xlu0 %2053
      %2057 = vset.pattern.permute.xlu0 1
      %2058 = vperm.xlu0 %2057, %v279
      %v2059 = vpop.permute.xlu0 %2058
      %2062 = vset.pattern.permute.xlu0 1
      %2063 = vperm.xlu0 %2062, %v280
      %v2064 = vpop.permute.xlu0 %2063
      %2067 = vset.pattern.permute.xlu0 1
      %2068 = vperm.xlu0 %2067, %v281
      %v2069 = vpop.permute.xlu0 %2068
      %2072 = vset.pattern.permute.xlu0 1
      %2073 = vperm.xlu0 %2072, %v282
      %v2074 = vpop.permute.xlu0 %2073
      %2077 = vset.pattern.permute.xlu0 1
      %2078 = vperm.xlu0 %2077, %v283
      %v2079 = vpop.permute.xlu0 %2078
      %2082 = vset.pattern.permute.xlu0 1
      %2083 = vperm.xlu0 %2082, %v284
      %v2084 = vpop.permute.xlu0 %2083
      %2087 = vset.pattern.permute.xlu0 1
      %2088 = vperm.xlu0 %2087, %v285
      %v2089 = vpop.permute.xlu0 %2088
      %2092 = vset.pattern.permute.xlu0 1
      %2093 = vperm.xlu0 %2092, %v286
      %v2094 = vpop.permute.xlu0 %2093
      %2097 = vset.pattern.permute.xlu0 1
      %2098 = vperm.xlu0 %2097, %v287
      %v2099 = vpop.permute.xlu0 %2098
      %2102 = vset.pattern.permute.xlu0 1
      %2103 = vperm.xlu0 %2102, %v288
      %v2104 = vpop.permute.xlu0 %2103
      %2107 = vset.pattern.permute.xlu0 1
      %2108 = vperm.xlu0 %2107, %v289
      %v2109 = vpop.permute.xlu0 %2108
      %2112 = vset.pattern.permute.xlu0 1
      %2113 = vperm.xlu0 %2112, %v290
      %v2114 = vpop.permute.xlu0 %2113
      %2117 = vset.pattern.permute.xlu0 1
      %2118 = vperm.xlu0 %2117, %v291
      %v2119 = vpop.permute.xlu0 %2118
      %2122 = vset.pattern.permute.xlu0 1
      %2123 = vperm.xlu0 %2122, %v292
      %v2124 = vpop.permute.xlu0 %2123
      %2127 = vset.pattern.permute.xlu0 1
      %2128 = vperm.xlu0 %2127, %v293
      %v2129 = vpop.permute.xlu0 %2128
      %2132 = vset.pattern.permute.xlu0 1
      %2133 = vperm.xlu0 %2132, %v294
      %v2134 = vpop.permute.xlu0 %2133
      %2137 = vset.pattern.permute.xlu0 1
      %2138 = vperm.xlu0 %2137, %v295
      %v2139 = vpop.permute.xlu0 %2138
      %2142 = vset.pattern.permute.xlu0 1
      %2143 = vperm.xlu0 %2142, %v296
      %v2144 = vpop.permute.xlu0 %2143
      %2147 = vset.pattern.permute.xlu0 1
      %2148 = vperm.xlu0 %2147, %v297
      %v2149 = vpop.permute.xlu0 %2148
      %2152 = vset.pattern.permute.xlu0 1
      %2153 = vperm.xlu0 %2152, %v298
      %v2154 = vpop.permute.xlu0 %2153
      %2157 = vset.pattern.permute.xlu0 1
      %2158 = vperm.xlu0 %2157, %v299
      %v2159 = vpop.permute.xlu0 %2158
      %2162 = vset.pattern.permute.xlu0 1
      %2163 = vperm.xlu0 %2162, %v300
      %v2164 = vpop.permute.xlu0 %2163
      %2167 = vset.pattern.permute.xlu0 1
      %2168 = vperm.xlu0 %2167, %v301
      %v2169 = vpop.permute.xlu0 %2168
      %v2171 = vadd.f32 %v1898, %v1979
      %v2172 = vadd.f32 %v1899, %v1979
      %v2173 = vadd.f32 %v1900, %v1984
      %v2174 = vadd.f32 %v1901, %v1984
      %v2175 = vadd.f32 %v1902, %v1989
      %v2176 = vadd.f32 %v1903, %v1989
      %v2177 = vadd.f32 %v1904, %v1994
      %v2178 = vadd.f32 %v1905, %v1994
      %v2179 = vadd.f32 %v1906, %v1999
      %v2180 = vadd.f32 %v1907, %v1999
      %v2181 = vadd.f32 %v1908, %v2004
      %v2182 = vadd.f32 %v1909, %v2004
      %v2183 = vadd.f32 %v1910, %v2009
      %v2184 = vadd.f32 %v1911, %v2009
      %v2185 = vadd.f32 %v1912, %v2014
      %v2186 = vadd.f32 %v1913, %v2014
      %v2187 = vadd.f32 %v1914, %v2019
      %v2188 = vadd.f32 %v1915, %v2019
      %v2189 = vadd.f32 %v1916, %v2024
      %v2190 = vadd.f32 %v1917, %v2024
      %v2191 = vadd.f32 %v1918, %v2029
      %v2192 = vadd.f32 %v1919, %v2029
      %v2193 = vadd.f32 %v1920, %v2034
      %v2194 = vadd.f32 %v1921, %v2034
      %v2195 = vadd.f32 %v1922, %v2039
      %v2196 = vadd.f32 %v1923, %v2039
      %v2197 = vadd.f32 %v1924, %v2044
      %v2198 = vadd.f32 %v1925, %v2044
      %v2199 = vadd.f32 %v1926, %v2049
      %v2200 = vadd.f32 %v1927, %v2049
      %v2201 = vadd.f32 %v1928, %v2054
      %v2202 = vadd.f32 %v1929, %v2054
      %v2203 = vadd.f32 %v1930, %v2059
      %v2204 = vadd.f32 %v1931, %v2059
      %v2205 = vadd.f32 %v1932, %v2064
      %v2206 = vadd.f32 %v1933, %v2064
      %v2207 = vadd.f32 %v1934, %v2069
      %v2208 = vadd.f32 %v1935, %v2069
      %v2209 = vadd.f32 %v1936, %v2074
      %v2210 = vadd.f32 %v1937, %v2074
      %v2211 = vadd.f32 %v1938, %v2079
      %v2212 = vadd.f32 %v1939, %v2079
      %v2213 = vadd.f32 %v1940, %v2084
      %v2214 = vadd.f32 %v1941, %v2084
      %v2215 = vadd.f32 %v1942, %v2089
      %v2216 = vadd.f32 %v1943, %v2089
      %v2217 = vadd.f32 %v1944, %v2094
      %v2218 = vadd.f32 %v1945, %v2094
      %v2219 = vadd.f32 %v1946, %v2099
      %v2220 = vadd.f32 %v1947, %v2099
      %v2221 = vadd.f32 %v1948, %v2104
      %v2222 = vadd.f32 %v1949, %v2104
      %v2223 = vadd.f32 %v1950, %v2109
      %v2224 = vadd.f32 %v1951, %v2109
      %v2225 = vadd.f32 %v1952, %v2114
      %v2226 = vadd.f32 %v1953, %v2114
      %v2227 = vadd.f32 %v1954, %v2119
      %v2228 = vadd.f32 %v1955, %v2119
      %v2229 = vadd.f32 %v1956, %v2124
      %v2230 = vadd.f32 %v1957, %v2124
      %v2231 = vadd.f32 %v1958, %v2129
      %v2232 = vadd.f32 %v1959, %v2129
      %v2233 = vadd.f32 %v1960, %v2134
      %v2234 = vadd.f32 %v1961, %v2134
      %v2235 = vadd.f32 %v1962, %v2139
      %v2236 = vadd.f32 %v1963, %v2139
      %v2237 = vadd.f32 %v1964, %v2144
      %v2238 = vadd.f32 %v1965, %v2144
      %v2239 = vadd.f32 %v1966, %v2149
      %v2240 = vadd.f32 %v1967, %v2149
      %v2241 = vadd.f32 %v1968, %v2154
      %v2242 = vadd.f32 %v1969, %v2154
      %v2243 = vadd.f32 %v1970, %v2159
      %v2244 = vadd.f32 %v1971, %v2159
      %v2245 = vadd.f32 %v1972, %v2164
      %v2246 = vadd.f32 %v1973, %v2164
      %v2247 = vadd.f32 %v1974, %v2169
      %v2248 = vadd.f32 %v1975, %v2169
      %v2249 = vmax.f32 %v2171, 0.0
      %v2250 = vmax.f32 %v2172, 0.0
      %v2251 = vmax.f32 %v2173, 0.0
      %v2252 = vmax.f32 %v2174, 0.0
      %v2253 = vmax.f32 %v2175, 0.0
      %v2254 = vmax.f32 %v2176, 0.0
      %v2255 = vmax.f32 %v2177, 0.0
      %v2256 = vmax.f32 %v2178, 0.0
      %v2257 = vmax.f32 %v2179, 0.0
      %v2258 = vmax.f32 %v2180, 0.0
      %v2259 = vmax.f32 %v2181, 0.0
      %v2260 = vmax.f32 %v2182, 0.0
      %v2261 = vmax.f32 %v2183, 0.0
      %v2262 = vmax.f32 %v2184, 0.0
      %v2263 = vmax.f32 %v2185, 0.0
      %v2264 = vmax.f32 %v2186, 0.0
      %v2265 = vmax.f32 %v2187, 0.0
      %v2266 = vmax.f32 %v2188, 0.0
      %v2267 = vmax.f32 %v2189, 0.0
      %v2268 = vmax.f32 %v2190, 0.0
      %v2269 = vmax.f32 %v2191, 0.0
      %v2270 = vmax.f32 %v2192, 0.0
      %v2271 = vmax.f32 %v2193, 0.0
      %v2272 = vmax.f32 %v2194, 0.0
      %v2273 = vmax.f32 %v2195, 0.0
      %v2274 = vmax.f32 %v2196, 0.0
      %v2275 = vmax.f32 %v2197, 0.0
      %v2276 = vmax.f32 %v2198, 0.0
      %v2277 = vmax.f32 %v2199, 0.0
      %v2278 = vmax.f32 %v2200, 0.0
      %v2279 = vmax.f32 %v2201, 0.0
      %v2280 = vmax.f32 %v2202, 0.0
      %v2281 = vmax.f32 %v2203, 0.0
      %v2282 = vmax.f32 %v2204, 0.0
      %v2283 = vmax.f32 %v2205, 0.0
      %v2284 = vmax.f32 %v2206, 0.0
      %v2285 = vmax.f32 %v2207, 0.0
      %v2286 = vmax.f32 %v2208, 0.0
      %v2287 = vmax.f32 %v2209, 0.0
      %v2288 = vmax.f32 %v2210, 0.0
      %v2289 = vmax.f32 %v2211, 0.0
      %v2290 = vmax.f32 %v2212, 0.0
      %v2291 = vmax.f32 %v2213, 0.0
      %v2292 = vmax.f32 %v2214, 0.0
      %v2293 = vmax.f32 %v2215, 0.0
      %v2294 = vmax.f32 %v2216, 0.0
      %v2295 = vmax.f32 %v2217, 0.0
      %v2296 = vmax.f32 %v2218, 0.0
      %v2297 = vmax.f32 %v2219, 0.0
      %v2298 = vmax.f32 %v2220, 0.0
      %v2299 = vmax.f32 %v2221, 0.0
      %v2300 = vmax.f32 %v2222, 0.0
      %v2301 = vmax.f32 %v2223, 0.0
      %v2302 = vmax.f32 %v2224, 0.0
      %v2303 = vmax.f32 %v2225, 0.0
      %v2304 = vmax.f32 %v2226, 0.0
      %v2305 = vmax.f32 %v2227, 0.0
      %v2306 = vmax.f32 %v2228, 0.0
      %v2307 = vmax.f32 %v2229, 0.0
      %v2308 = vmax.f32 %v2230, 0.0
      %v2309 = vmax.f32 %v2231, 0.0
      %v2310 = vmax.f32 %v2232, 0.0
      %v2311 = vmax.f32 %v2233, 0.0
      %v2312 = vmax.f32 %v2234, 0.0
      %v2313 = vmax.f32 %v2235, 0.0
      %v2314 = vmax.f32 %v2236, 0.0
      %v2315 = vmax.f32 %v2237, 0.0
      %v2316 = vmax.f32 %v2238, 0.0
      %v2317 = vmax.f32 %v2239, 0.0
      %v2318 = vmax.f32 %v2240, 0.0
      %v2319 = vmax.f32 %v2241, 0.0
      %v2320 = vmax.f32 %v2242, 0.0
      %v2321 = vmax.f32 %v2243, 0.0
      %v2322 = vmax.f32 %v2244, 0.0
      %v2323 = vmax.f32 %v2245, 0.0
      %v2324 = vmax.f32 %v2246, 0.0
      %v2325 = vmax.f32 %v2247, 0.0
      %v2326 = vmax.f32 %v2248, 0.0
      %2327 = vst [vmem:[%s196] sm:$0xff] %v2249
      %2328 = vst.msk [vmem:[%s196 + $0x8] sm:$0xff] %vm688, %v2250
      %2329 = vst [vmem:[%s196 + $0x10] sm:$0xff] %v2251
      %2330 = vst.msk [vmem:[%s196 + $0x18] sm:$0xff] %vm688, %v2252
      %2331 = vst [vmem:[%s196 + $0x20] sm:$0xff] %v2253
      %2332 = vst.msk [vmem:[%s196 + $0x28] sm:$0xff] %vm688, %v2254
      %2333 = vst [vmem:[%s196 + $0x30] sm:$0xff] %v2255
      %2334 = vst.msk [vmem:[%s196 + $0x38] sm:$0xff] %vm688, %v2256
      %2335 = vst [vmem:[%s196 + $0x40] sm:$0xff] %v2257
      %2336 = vst.msk [vmem:[%s196 + $0x48] sm:$0xff] %vm688, %v2258
      %2337 = vst [vmem:[%s196 + $0x50] sm:$0xff] %v2259
      %2338 = vst.msk [vmem:[%s196 + $0x58] sm:$0xff] %vm688, %v2260
      %2339 = vst [vmem:[%s196 + $0x60] sm:$0xff] %v2261
      %2340 = vst.msk [vmem:[%s196 + $0x68] sm:$0xff] %vm688, %v2262
      %2341 = vst [vmem:[%s196 + $0x70] sm:$0xff] %v2263
      %2342 = vst.msk [vmem:[%s196 + $0x78] sm:$0xff] %vm688, %v2264
      %2343 = vst [vmem:[%s196 + $0x80] sm:$0xff] %v2265
      %2344 = vst.msk [vmem:[%s196 + $0x88] sm:$0xff] %vm688, %v2266
      %2345 = vst [vmem:[%s196 + $0x90] sm:$0xff] %v2267
      %2346 = vst.msk [vmem:[%s196 + $0x98] sm:$0xff] %vm688, %v2268
      %2347 = vst [vmem:[%s196 + $0xa0] sm:$0xff] %v2269
      %2348 = vst.msk [vmem:[%s196 + $0xa8] sm:$0xff] %vm688, %v2270
      %2349 = vst [vmem:[%s196 + $0xb0] sm:$0xff] %v2271
      %2350 = vst.msk [vmem:[%s196 + $0xb8] sm:$0xff] %vm688, %v2272
      %2351 = vst [vmem:[%s196 + $0xc0] sm:$0xff] %v2273
      %2352 = vst.msk [vmem:[%s196 + $0xc8] sm:$0xff] %vm688, %v2274
      %2353 = vst [vmem:[%s196 + $0xd0] sm:$0xff] %v2275
      %2354 = vst.msk [vmem:[%s196 + $0xd8] sm:$0xff] %vm688, %v2276
      %2355 = vst [vmem:[%s196 + $0xe0] sm:$0xff] %v2277
      %2356 = vst.msk [vmem:[%s196 + $0xe8] sm:$0xff] %vm688, %v2278
      %2357 = vst [vmem:[%s196 + $0xf0] sm:$0xff] %v2279
      %2358 = vst.msk [vmem:[%s196 + $0xf8] sm:$0xff] %vm688, %v2280
      %2359 = vst [vmem:[%s196 + $0x100] sm:$0xff] %v2281
      %2360 = vst.msk [vmem:[%s196 + $0x108] sm:$0xff] %vm688, %v2282
      %2361 = vst [vmem:[%s196 + $0x110] sm:$0xff] %v2283
      %2362 = vst.msk [vmem:[%s196 + $0x118] sm:$0xff] %vm688, %v2284
      %2363 = vst [vmem:[%s196 + $0x120] sm:$0xff] %v2285
      %2364 = vst.msk [vmem:[%s196 + $0x128] sm:$0xff] %vm688, %v2286
      %2365 = vst [vmem:[%s196 + $0x130] sm:$0xff] %v2287
      %2366 = vst.msk [vmem:[%s196 + $0x138] sm:$0xff] %vm688, %v2288
      %2367 = vst [vmem:[%s196 + $0x140] sm:$0xff] %v2289
      %2368 = vst.msk [vmem:[%s196 + $0x148] sm:$0xff] %vm688, %v2290
      %2369 = vst [vmem:[%s196 + $0x150] sm:$0xff] %v2291
      %2370 = vst.msk [vmem:[%s196 + $0x158] sm:$0xff] %vm688, %v2292
      %2371 = vst [vmem:[%s196 + $0x160] sm:$0xff] %v2293
      %2372 = vst.msk [vmem:[%s196 + $0x168] sm:$0xff] %vm688, %v2294
      %2373 = vst [vmem:[%s196 + $0x170] sm:$0xff] %v2295
      %2374 = vst.msk [vmem:[%s196 + $0x178] sm:$0xff] %vm688, %v2296
      %2375 = vst [vmem:[%s196 + $0x180] sm:$0xff] %v2297
      %2376 = vst.msk [vmem:[%s196 + $0x188] sm:$0xff] %vm688, %v2298
      %2377 = vst [vmem:[%s196 + $0x190] sm:$0xff] %v2299
      %2378 = vst.msk [vmem:[%s196 + $0x198] sm:$0xff] %vm688, %v2300
      %2379 = vst [vmem:[%s196 + $0x1a0] sm:$0xff] %v2301
      %2380 = vst.msk [vmem:[%s196 + $0x1a8] sm:$0xff] %vm688, %v2302
      %2381 = vst [vmem:[%s196 + $0x1b0] sm:$0xff] %v2303
      %2382 = vst.msk [vmem:[%s196 + $0x1b8] sm:$0xff] %vm688, %v2304
      %2383 = vst [vmem:[%s196 + $0x1c0] sm:$0xff] %v2305
      %2384 = vst.msk [vmem:[%s196 + $0x1c8] sm:$0xff] %vm688, %v2306
      %2385 = vst [vmem:[%s196 + $0x1d0] sm:$0xff] %v2307
      %2386 = vst.msk [vmem:[%s196 + $0x1d8] sm:$0xff] %vm688, %v2308
      %2387 = vst [vmem:[%s196 + $0x1e0] sm:$0xff] %v2309
      %2388 = vst.msk [vmem:[%s196 + $0x1e8] sm:$0xff] %vm688, %v2310
      %2389 = vst [vmem:[%s196 + $0x1f0] sm:$0xff] %v2311
      %2390 = vst.msk [vmem:[%s196 + $0x1f8] sm:$0xff] %vm688, %v2312
      %2391 = vst [vmem:[%s196 + $0x200] sm:$0xff] %v2313
      %2392 = vst.msk [vmem:[%s196 + $0x208] sm:$0xff] %vm688, %v2314
      %2393 = vst [vmem:[%s196 + $0x210] sm:$0xff] %v2315
      %2394 = vst.msk [vmem:[%s196 + $0x218] sm:$0xff] %vm688, %v2316
      %2395 = vst [vmem:[%s196 + $0x220] sm:$0xff] %v2317
      %2396 = vst.msk [vmem:[%s196 + $0x228] sm:$0xff] %vm688, %v2318
      %2397 = vst [vmem:[%s196 + $0x230] sm:$0xff] %v2319
      %2398 = vst.msk [vmem:[%s196 + $0x238] sm:$0xff] %vm688, %v2320
      %2399 = vst [vmem:[%s196 + $0x240] sm:$0xff] %v2321
      %2400 = vst.msk [vmem:[%s196 + $0x248] sm:$0xff] %vm688, %v2322
      %2401 = vst [vmem:[%s196 + $0x250] sm:$0xff] %v2323
      %2402 = vst.msk [vmem:[%s196 + $0x258] sm:$0xff] %vm688, %v2324
      %2403 = vst [vmem:[%s196 + $0x260] sm:$0xff] %v2325
      %2404 = vst.msk [vmem:[%s196 + $0x268] sm:$0xff] %vm688, %v2326
      %s2405 = smul.u32 39, %s14
      %p2406 = scmp.lt.s32.totalorder %s2405, 77
      %s2407 = scalar_select %p2406, %s2405, 77
      %s2408 = smul.addr %s2407, 2
      %s2409 = smul.addr %s2408, 8
      %s2410 = scalar_lea.vmem %s3, %s2409
      // Predicated region
      $region33: #{tpu_custom_call.1} parent=31 // pred_check
        %p2411 = pneg %p105
      $region34: #{tpu_custom_call.1} parent=31 // pred_check_branch
        %2413 = sbr.rel (%p2411) target = $region36
      $region35: #{tpu_custom_call.1} parent=31 // pred_region
        %s2414 = smul.u32 39, %s14
      $region36: #{tpu_custom_call.1} parent=31 // pred_fallthru
        _
    $region32: #{tpu_custom_call.1} parent=5 // pred_fallthru
      _
    %p2415 = scmp.le.s32.totalorder 2, %s9
    // Predicated region
    $region37: #{tpu_custom_call.1} parent=5 // pred_check
      %p2416 = pneg %p2415
    $region38: #{tpu_custom_call.1} parent=5 // pred_check_branch
      %2418 = sbr.rel (%p2416) target = $region40
    $region39: #{tpu_custom_call.1} parent=5 // pred_region
      %s2419 = ssub.s32 %s9, 2
      // Predicated region
      $region41: #{tpu_custom_call.1} parent=39 // pred_check
        %p2420 = pneg %p111
      $region42: #{tpu_custom_call.1} parent=39 // pred_check_branch
        %2422 = sbr.rel (%p2420) target = $region44
      $region43: #{tpu_custom_call.1} parent=39 // pred_region
        %s2423 = smul.u32 39, %s15
        %p2424 = scmp.lt.s32.totalorder %s2423, 77
        %s2425 = scalar_select %p2424, %s2423, 77
        %s2426 = smul.addr %s2425, 2
        %s2427 = smul.addr %s2426, 8
        %s2428 = scalar_lea.vmem %s3, %s2427
      $region44: #{tpu_custom_call.1} parent=39 // pred_fallthru
        _
    $region40: #{tpu_custom_call.1} parent=5 // pred_fallthru
      _
  $region6: #{tpu_custom_call.1} parent=0 // loop_footer
    %s13 = sadd.s32 1, %s9
  $region7: #{tpu_custom_call.1} parent=0 // loop_footer_branch
    %8 = sbr.rel target = $region3
  $region8: #{tpu_custom_call.1} parent=0 // loop_exit
    _

</llo_original>
